<compile_context>
chip_gen: v6e
topology: v6e:2x2x1
jax: 0.10.0
libtpu: 0.0.40
codegen_flags: <defaults>
</compile_context>

<pallas_src>
import functools

import jax
import jax.numpy as jnp
from jax.experimental import pallas as pl
from jax.experimental.pallas import tpu as pltpu


def _aug_kernel(params_ref, rir_ref, sig_ref,
                mix_ref, cr_ref, nr_ref,
                tail_ref, e_ref,
                *, n_taps, tile, n_tiles, inv_count):
    """Fused reverb + SNR mix for one (batch, time-tile) grid point.

    params_ref (SMEM) : (2,)             [10**(snr/10), scale]
    rir_ref           : (1, 2, M, L)     RIRs (0 = clean, 1 = noise)
    sig_ref           : (1, 2, TILE)     stacked signals (0 = clean, 1 = noise)
    mix_ref           : (1, M, T)        resident: scale * (clean_rev + gain * noise_rev)
    cr_ref            : (1, M, T)        resident: scale * clean_reverb
    nr_ref            : (1, M, T)        resident: raw noise_reverb during the loop,
                                         scale * gain * noise_reverb after the last tile
    tail_ref          : VMEM (2, 128)    last 128 samples of the previous tile (carry)
    e_ref             : VMEM (2, 128)    per-batch [sum(cr^2), sum(nr^2)] accumulator
    """
    j = pl.program_id(1)
    snr_lin = params_ref[0]
    scale = params_ref[1]

    P = 128  # carried tail length (>= L - 1 since L <= 128)

    @pl.when(j == 0)
    def _():  # start of a new batch item
        tail_ref[...] = jnp.zeros_like(tail_ref)
        e_ref[...] = jnp.zeros_like(e_ref)

    cur = sig_ref[0]                                              # (2, TILE)
    ext = jnp.concatenate([tail_ref[...], cur], axis=1)           # (2, P + TILE)

    # im2col tap matrices: taps[l, t] = signal[tile_start + t - l]
    # (positions t < l read the previous tile's tail; zeros for the first tile)
    tapsc = jnp.concatenate(
        [ext[0:1, P - l:P - l + tile] for l in range(n_taps)], axis=0)   # (L, TILE)
    tapsn = jnp.concatenate(
        [ext[1:2, P - l:P - l + tile] for l in range(n_taps)], axis=0)   # (L, TILE)

    hc = rir_ref[0, 0]                                            # (M, L)
    hn = rir_ref[0, 1]

    # FIR reverb on the MXU (f32 accumulation).
    cr = jnp.dot(hc, tapsc, preferred_element_type=jnp.float32)   # (M, TILE)
    nr = jnp.dot(hn, tapsn, preferred_element_type=jnp.float32)   # (M, TILE)

    # Per-batch energy accumulation on the *raw* reverbs.
    e_ref[0:1, :] = e_ref[0:1, :] + jnp.sum(cr * cr)
    e_ref[1:2, :] = e_ref[1:2, :] + jnp.sum(nr * nr)

    # Write this tile into the per-batch resident outputs.
    ts = pl.multiple_of(j * tile, tile)
    cr_ref[0, :, pl.ds(ts, tile)] = (scale * cr).astype(cr_ref.dtype)
    nr_ref[0, :, pl.ds(ts, tile)] = nr.astype(nr_ref.dtype)       # raw; scaled below

    # Carry the tail of this tile for the next tile's causal boundary.
    tail_ref[...] = cur[:, tile - P:]

    @pl.when(j == n_tiles - 1)
    def _():  # finalize: SNR gain + amplitude scale + mixture, all in VMEM
        e = e_ref[...]                                            # (2, 128)
        e_c = e[0:1, 0:1] * inv_count                             # mean over (M, T)
        e_n = e[1:2, 0:1] * inv_count
        gain = jnp.sqrt(e_c / (e_n * snr_lin + 1e-8))             # (1, 1)
        nr_s = (scale * gain) * nr_ref[0, :, :]
        mix_ref[0, :, :] = (cr_ref[0, :, :] + nr_s).astype(mix_ref.dtype)
        nr_ref[0, :, :] = nr_s.astype(nr_ref.dtype)


def _pick_time_tile(T, target=8192):
    assert T % 128 == 0, "T must be a multiple of 128"
    t = min(T, target)
    t -= t % 128
    while T % t:
        t -= 128
    return t


def _vmem_limit_bytes(B, T, M, L, tile):
    # resident outputs (assume double-buffered) + streamed input + taps/reverb temporaries
    need = (2 * 3 * M * T + 2 * 2 * tile + 2 * 2 * M * L
            + (2 * L + 2 * M + 8) * tile) * 4 + (4 << 20)
    if need <= (30 << 20):
        return None                       # default scoped limit is plenty
    # TODO(synk): beyond ~60 MiB (v7x physical VMEM headroom) a streamed two-pass
    # fallback is needed; cap here and let very long audio raise loudly.
    return int(min(need, 60 << 20))


@functools.partial(jax.jit, static_argnames=("time_tile", "channels_last"))
def _augment_pallas(cleans, noises, rirs, params, *, time_tile, channels_last):
    B, T = cleans.shape
    _, _, M, L = rirs.shape
    tile = time_tile
    assert tile % 128 == 0 and tile >= 128 and T % tile == 0
    assert L <= 128, "RIR length must be <= 128 (single lane-tile boundary carry)"
    nT = T // tile

    # Stack clean/noise into one (B, 2, T) stream (one input DMA stream).
    sig = jnp.stack([cleans.astype(jnp.float32), noises.astype(jnp.float32)], axis=1)
    rirs_f = rirs.astype(jnp.float32)

    kernel = functools.partial(
        _aug_kernel, n_taps=L, tile=tile, n_tiles=nT, inv_count=1.0 / float(M * T))

    res_spec = pl.BlockSpec((1, M, T), lambda b, j: (b, 0, 0))    # per-batch resident

    mix, clean_reverbs, noise_reverbs = pl.pallas_call(
        kernel,
        out_shape=(jax.ShapeDtypeStruct((B, M, T), jnp.float32),
                   jax.ShapeDtypeStruct((B, M, T), jnp.float32),
                   jax.ShapeDtypeStruct((B, M, T), jnp.float32)),
        grid=(B, nT),
        in_specs=[
            pl.BlockSpec(memory_space=pltpu.MemorySpace.SMEM),            # [snr_lin, scale]
            pl.BlockSpec((1, 2, M, L), lambda b, j: (b, 0, 0, 0)),        # RIRs (per batch)
            pl.BlockSpec((1, 2, tile), lambda b, j: (b, 0, j)),           # stacked signals
        ],
        out_specs=(res_spec, res_spec, res_spec),
        scratch_shapes=[
            pltpu.VMEM((2, 128), jnp.float32),   # previous-tile tail carry
            pltpu.VMEM((2, 128), jnp.float32),   # per-batch energy accumulator
        ],
        compiler_params=pltpu.CompilerParams(
            dimension_semantics=("parallel", "arbitrary"),
            vmem_limit_bytes=_vmem_limit_bytes(B, T, M, L, tile)),
    )(params, rirs_f, sig)

    if channels_last:
        # PyTorch .transpose(1, 2).  Costs extra HBM traffic; pass channels_last=False to
        # keep the lane-dense (B, M, T) layout (recommended by the perf review).
        tr = lambda a: jnp.transpose(a, (0, 2, 1))
        return tr(mix), tr(clean_reverbs), tr(noise_reverbs)
    return mix, clean_reverbs, noise_reverbs


def augmentation_forward(cleans, noises, rirs, snr, scale,
                         *, time_tile=None, channels_last=True):
    """Pallas equivalent of Augmentation.forward (snr/scale drawn host-side, matching the
    np.random.rand() calls in the PyTorch module)."""
    B, T = cleans.shape
    if time_tile is None:
        time_tile = _pick_time_tile(T)
    params = jnp.array([10.0 ** (snr / 10.0), scale], jnp.float32)
    inputs, clean_reverbs, noise_reverbs = _augment_pallas(
        cleans, noises, rirs, params,
        time_tile=time_tile, channels_last=channels_last)
    return inputs, cleans, noises, clean_reverbs, noise_reverbs


def _reference(cleans, noises, rirs, snr, scale):
    """Pure-JAX reference with the same assumed semantics (for sanity checking)."""
    B, T = cleans.shape
    _, _, M, L = rirs.shape
    cpad = jnp.pad(cleans, ((0, 0), (L - 1, 0)))
    npad = jnp.pad(noises, ((0, 0), (L - 1, 0)))

    def reverb(xpad, h):  # xpad: (B, T+L-1), h: (B, M, L)
        taps = jnp.stack([xpad[:, L - 1 - l:L - 1 - l + T] for l in range(L)], axis=1)
        return jnp.einsum('bml,blt->bmt', h, taps,
                          precision=jax.lax.Precision.HIGHEST)

    cr = reverb(cpad, rirs[:, 0])
    nr = reverb(npad, rirs[:, 1])
    snr_lin = 10.0 ** (snr / 10.0)
    e_c = jnp.mean(cr * cr, axis=(1, 2), keepdims=True)
    e_n = jnp.mean(nr * nr, axis=(1, 2), keepdims=True)
    gain = jnp.sqrt(e_c / (e_n * snr_lin + 1e-8))
    nr_s = gain * nr
    mix = scale * (cr + nr_s)
    tr = lambda a: jnp.transpose(a, (0, 2, 1))
    return tr(mix), tr(scale * cr), tr(scale * nr_s)


if __name__ == "__main__":
    # Keep matmuls in true f32 everywhere so the reference and the kernel agree tightly.
    jax.config.update("jax_default_matmul_precision", "highest")

    B, T, M, L = 2, 256, 8, 16

    key = jax.random.PRNGKey(0)
    k_clean, k_noise, k_rir, k_scale, k_snr = jax.random.split(key, 5)
    cleans = jax.random.normal(k_clean, (B, T), jnp.float32)
    noises = jax.random.normal(k_noise, (B, T), jnp.float32)
    # deterministic synthetic RIRs with decaying taps
    decay = jnp.exp(-0.3 * jnp.arange(L, dtype=jnp.float32))
    rirs = jax.random.normal(k_rir, (B, 2, M, L), jnp.float32) * decay

    # host-side random scalars (np.random.rand() in the original), drawn deterministically
    scale = float(jax.random.uniform(k_scale)) * 0.7 + 0.2
    snr = float(jax.random.uniform(k_snr)) * 10.0

    ref_mix, ref_cr, ref_nr = _reference(cleans, noises, rirs, snr, scale)

    # single time tile (tile == T) and multi-tile (exercises the cross-tile boundary
    # carry and the resident-output / energy accumulation across time tiles)
    for tile in (None, 128):
        outs = augmentation_forward(cleans, noises, rirs, snr, scale, time_tile=tile)
        outs = jax.block_until_ready(outs)
        inputs, cleans_out, noises_out, clean_reverbs, noise_reverbs = outs

        assert inputs.shape == (B, T, M)
        assert jnp.allclose(inputs, ref_mix, atol=2e-3, rtol=2e-3)
        assert jnp.allclose(clean_reverbs, ref_cr, atol=2e-3, rtol=2e-3)
        assert jnp.allclose(noise_reverbs, ref_nr, atol=2e-3, rtol=2e-3)
        assert jnp.array_equal(cleans_out, cleans) and jnp.array_equal(noises_out, noises)

    print("KERNEL_OK")
</pallas_src>

<mosaic_0001>
module attributes {stable_mosaic.version = 11 : i64} {
  func.func @_aug_kernel(%arg0: i32, %arg1: i32, %arg2: memref<2xf32, #tpu.memory_space<smem>>, %arg3: memref<1x2x8x16xf32, #tpu.memory_space<vmem>>, %arg4: memref<1x2x256xf32, #tpu.memory_space<vmem>>, %arg5: memref<1x8x256xf32, #tpu.memory_space<vmem>>, %arg6: memref<1x8x256xf32, #tpu.memory_space<vmem>>, %arg7: memref<1x8x256xf32, #tpu.memory_space<vmem>>, %arg8: memref<2x128xf32, #tpu.memory_space<vmem>>, %arg9: memref<2x128xf32, #tpu.memory_space<vmem>>) attributes {dimension_semantics = [#tpu.dimension_semantics<parallel>, #tpu.dimension_semantics<arbitrary>], iteration_bounds = array<i64: 2, 1>, scalar_prefetch = 0 : i64, scratch_operands = 2 : i64, tpu.core_type = #tpu.core_type<tc>, window_params = [{transform_indices = @transform_0, window_bounds = array<i64: 2>}, {transform_indices = @transform_1, window_bounds = array<i64: 1, 2, 8, 16>}, {transform_indices = @transform_2, window_bounds = array<i64: 1, 2, 256>}, {transform_indices = @transform_3, window_bounds = array<i64: 1, 8, 256>}, {transform_indices = @transform_4, window_bounds = array<i64: 1, 8, 256>}, {transform_indices = @transform_5, window_bounds = array<i64: 1, 8, 256>}]} {
    %c0 = arith.constant 0 : index
    %0 = memref.load %arg2[%c0] : memref<2xf32, #tpu.memory_space<smem>>
    %c1 = arith.constant 1 : index
    %1 = memref.load %arg2[%c1] : memref<2xf32, #tpu.memory_space<smem>>
    %c0_i32 = arith.constant 0 : i32
    %2 = arith.cmpi eq, %arg1, %c0_i32 : i32
    %3 = arith.extui %2 : i1 to i32
    %c0_i32_0 = arith.constant 0 : i32
    %4 = arith.cmpi ne, %3, %c0_i32_0 : i32
    scf.if %4 {
      %cst_33 = arith.constant 0.000000e+00 : f32
      %84 = vector.broadcast %cst_33 : f32 to vector<2x128xf32>
      %c0_34 = arith.constant 0 : index
      %c0_35 = arith.constant 0 : index
      %85 = vector.load %arg8[%c0_34, %c0_35] : memref<2x128xf32, #tpu.memory_space<vmem>>, vector<2x128xf32>
      tpu.vector_store %arg8[%c0_34, %c0_35], %84 {strides = array<i32>} : memref<2x128xf32, #tpu.memory_space<vmem>>, vector<2x128xf32>,
      %cst_36 = arith.constant 0.000000e+00 : f32
      %86 = vector.broadcast %cst_36 : f32 to vector<2x128xf32>
      %c0_37 = arith.constant 0 : index
      %c0_38 = arith.constant 0 : index
      %87 = vector.load %arg9[%c0_37, %c0_38] : memref<2x128xf32, #tpu.memory_space<vmem>>, vector<2x128xf32>
      tpu.vector_store %arg9[%c0_37, %c0_38], %86 {strides = array<i32>} : memref<2x128xf32, #tpu.memory_space<vmem>>, vector<2x128xf32>,
    } else {
    }
    %c0_1 = arith.constant 0 : index
    %c0_2 = arith.constant 0 : index
    %c0_3 = arith.constant 0 : index
    %5 = vector.load %arg4[%c0_1, %c0_2, %c0_3] : memref<1x2x256xf32, #tpu.memory_space<vmem>>, vector<1x2x256xf32>
    %6 = vector.shape_cast %5 : vector<1x2x256xf32> to vector<2x256xf32>
    %c0_4 = arith.constant 0 : index
    %c0_5 = arith.constant 0 : index
    %7 = vector.load %arg8[%c0_4, %c0_5] : memref<2x128xf32, #tpu.memory_space<vmem>>, vector<2x128xf32>
    %8 = tpu.concatenate %7, %6 in 1 : vector<2x128xf32>, vector<2x256xf32> -> vector<2x384xf32>
    %9 = vector.extract_strided_slice %8 {offsets = [0, 128], sizes = [1, 256], strides = [1, 1]} : vector<2x384xf32> to vector<1x256xf32>
    %10 = vector.extract_strided_slice %8 {offsets = [0, 127], sizes = [1, 256], strides = [1, 1]} : vector<2x384xf32> to vector<1x256xf32>
    %11 = vector.extract_strided_slice %8 {offsets = [0, 126], sizes = [1, 256], strides = [1, 1]} : vector<2x384xf32> to vector<1x256xf32>
    %12 = vector.extract_strided_slice %8 {offsets = [0, 125], sizes = [1, 256], strides = [1, 1]} : vector<2x384xf32> to vector<1x256xf32>
    %13 = vector.extract_strided_slice %8 {offsets = [0, 124], sizes = [1, 256], strides = [1, 1]} : vector<2x384xf32> to vector<1x256xf32>
    %14 = vector.extract_strided_slice %8 {offsets = [0, 123], sizes = [1, 256], strides = [1, 1]} : vector<2x384xf32> to vector<1x256xf32>
    %15 = vector.extract_strided_slice %8 {offsets = [0, 122], sizes = [1, 256], strides = [1, 1]} : vector<2x384xf32> to vector<1x256xf32>
    %16 = vector.extract_strided_slice %8 {offsets = [0, 121], sizes = [1, 256], strides = [1, 1]} : vector<2x384xf32> to vector<1x256xf32>
    %17 = vector.extract_strided_slice %8 {offsets = [0, 120], sizes = [1, 256], strides = [1, 1]} : vector<2x384xf32> to vector<1x256xf32>
    %18 = vector.extract_strided_slice %8 {offsets = [0, 119], sizes = [1, 256], strides = [1, 1]} : vector<2x384xf32> to vector<1x256xf32>
    %19 = vector.extract_strided_slice %8 {offsets = [0, 118], sizes = [1, 256], strides = [1, 1]} : vector<2x384xf32> to vector<1x256xf32>
    %20 = vector.extract_strided_slice %8 {offsets = [0, 117], sizes = [1, 256], strides = [1, 1]} : vector<2x384xf32> to vector<1x256xf32>
    %21 = vector.extract_strided_slice %8 {offsets = [0, 116], sizes = [1, 256], strides = [1, 1]} : vector<2x384xf32> to vector<1x256xf32>
    %22 = vector.extract_strided_slice %8 {offsets = [0, 115], sizes = [1, 256], strides = [1, 1]} : vector<2x384xf32> to vector<1x256xf32>
    %23 = vector.extract_strided_slice %8 {offsets = [0, 114], sizes = [1, 256], strides = [1, 1]} : vector<2x384xf32> to vector<1x256xf32>
    %24 = vector.extract_strided_slice %8 {offsets = [0, 113], sizes = [1, 256], strides = [1, 1]} : vector<2x384xf32> to vector<1x256xf32>
    %25 = tpu.concatenate %9, %10, %11, %12, %13, %14, %15, %16, %17, %18, %19, %20, %21, %22, %23, %24 in 0 : vector<1x256xf32>, vector<1x256xf32>, vector<1x256xf32>, vector<1x256xf32>, vector<1x256xf32>, vector<1x256xf32>, vector<1x256xf32>, vector<1x256xf32>, vector<1x256xf32>, vector<1x256xf32>, vector<1x256xf32>, vector<1x256xf32>, vector<1x256xf32>, vector<1x256xf32>, vector<1x256xf32>, vector<1x256xf32> -> vector<16x256xf32>
    %26 = vector.extract_strided_slice %8 {offsets = [1, 128], sizes = [1, 256], strides = [1, 1]} : vector<2x384xf32> to vector<1x256xf32>
    %27 = vector.extract_strided_slice %8 {offsets = [1, 127], sizes = [1, 256], strides = [1, 1]} : vector<2x384xf32> to vector<1x256xf32>
    %28 = vector.extract_strided_slice %8 {offsets = [1, 126], sizes = [1, 256], strides = [1, 1]} : vector<2x384xf32> to vector<1x256xf32>
    %29 = vector.extract_strided_slice %8 {offsets = [1, 125], sizes = [1, 256], strides = [1, 1]} : vector<2x384xf32> to vector<1x256xf32>
    %30 = vector.extract_strided_slice %8 {offsets = [1, 124], sizes = [1, 256], strides = [1, 1]} : vector<2x384xf32> to vector<1x256xf32>
    %31 = vector.extract_strided_slice %8 {offsets = [1, 123], sizes = [1, 256], strides = [1, 1]} : vector<2x384xf32> to vector<1x256xf32>
    %32 = vector.extract_strided_slice %8 {offsets = [1, 122], sizes = [1, 256], strides = [1, 1]} : vector<2x384xf32> to vector<1x256xf32>
    %33 = vector.extract_strided_slice %8 {offsets = [1, 121], sizes = [1, 256], strides = [1, 1]} : vector<2x384xf32> to vector<1x256xf32>
    %34 = vector.extract_strided_slice %8 {offsets = [1, 120], sizes = [1, 256], strides = [1, 1]} : vector<2x384xf32> to vector<1x256xf32>
    %35 = vector.extract_strided_slice %8 {offsets = [1, 119], sizes = [1, 256], strides = [1, 1]} : vector<2x384xf32> to vector<1x256xf32>
    %36 = vector.extract_strided_slice %8 {offsets = [1, 118], sizes = [1, 256], strides = [1, 1]} : vector<2x384xf32> to vector<1x256xf32>
    %37 = vector.extract_strided_slice %8 {offsets = [1, 117], sizes = [1, 256], strides = [1, 1]} : vector<2x384xf32> to vector<1x256xf32>
    %38 = vector.extract_strided_slice %8 {offsets = [1, 116], sizes = [1, 256], strides = [1, 1]} : vector<2x384xf32> to vector<1x256xf32>
    %39 = vector.extract_strided_slice %8 {offsets = [1, 115], sizes = [1, 256], strides = [1, 1]} : vector<2x384xf32> to vector<1x256xf32>
    %40 = vector.extract_strided_slice %8 {offsets = [1, 114], sizes = [1, 256], strides = [1, 1]} : vector<2x384xf32> to vector<1x256xf32>
    %41 = vector.extract_strided_slice %8 {offsets = [1, 113], sizes = [1, 256], strides = [1, 1]} : vector<2x384xf32> to vector<1x256xf32>
    %42 = tpu.concatenate %26, %27, %28, %29, %30, %31, %32, %33, %34, %35, %36, %37, %38, %39, %40, %41 in 0 : vector<1x256xf32>, vector<1x256xf32>, vector<1x256xf32>, vector<1x256xf32>, vector<1x256xf32>, vector<1x256xf32>, vector<1x256xf32>, vector<1x256xf32>, vector<1x256xf32>, vector<1x256xf32>, vector<1x256xf32>, vector<1x256xf32>, vector<1x256xf32>, vector<1x256xf32>, vector<1x256xf32>, vector<1x256xf32> -> vector<16x256xf32>
    %c0_6 = arith.constant 0 : index
    %c0_7 = arith.constant 0 : index
    %c0_8 = arith.constant 0 : index
    %c0_9 = arith.constant 0 : index
    %43 = vector.load %arg3[%c0_6, %c0_7, %c0_8, %c0_9] : memref<1x2x8x16xf32, #tpu.memory_space<vmem>>, vector<1x1x8x16xf32>
    %44 = vector.shape_cast %43 : vector<1x1x8x16xf32> to vector<8x16xf32>
    %c0_10 = arith.constant 0 : index
    %c1_11 = arith.constant 1 : index
    %c0_12 = arith.constant 0 : index
    %c0_13 = arith.constant 0 : index
    %45 = vector.load %arg3[%c0_10, %c1_11, %c0_12, %c0_13] : memref<1x2x8x16xf32, #tpu.memory_space<vmem>>, vector<1x1x8x16xf32>
    %46 = vector.shape_cast %45 : vector<1x1x8x16xf32> to vector<8x16xf32>
    %cst = arith.constant dense<0.000000e+00> : vector<8x256xf32>
    %47 = tpu.matmul %44, %25, %cst {dimension_numbers = #tpu.dot_dimension_numbers<[1], [0], [0], [1], [0, 0, 1, 1], [], []>, precision = #tpu.contract_precision<fp32>} : vector<8x16xf32>, vector<16x256xf32>, vector<8x256xf32> -> vector<8x256xf32>
    %cst_14 = arith.constant dense<0.000000e+00> : vector<8x256xf32>
    %48 = tpu.matmul %46, %42, %cst_14 {dimension_numbers = #tpu.dot_dimension_numbers<[1], [0], [0], [1], [0, 0, 1, 1], [], []>, precision = #tpu.contract_precision<fp32>} : vector<8x16xf32>, vector<16x256xf32>, vector<8x256xf32> -> vector<8x256xf32>
    %c0_15 = arith.constant 0 : index
    %c0_16 = arith.constant 0 : index
    %49 = vector.load %arg9[%c0_15, %c0_16] : memref<2x128xf32, #tpu.memory_space<vmem>>, vector<1x128xf32>
    %50 = arith.mulf %47, %47 : vector<8x256xf32>
    %51 = vector.shape_cast %50 : vector<8x256xf32> to vector<1x8x256xf32>
    %cst_17 = arith.constant dense<0.000000e+00> : vector<1xf32>
    %52 = vector.multi_reduction <add>, %51, %cst_17 [1, 2] : vector<1x8x256xf32> to vector<1xf32>
    %53 = vector.shape_cast %52 : vector<1xf32> to vector<1x1x1xf32>
    %54 = vector.extract %53[0, 0, 0] : f32 from vector<1x1x1xf32>
    %55 = vector.broadcast %54 : f32 to vector<1x128xf32>
    %56 = arith.addf %49, %55 : vector<1x128xf32>
    %c0_18 = arith.constant 0 : index
    %c0_19 = arith.constant 0 : index
    %57 = vector.load %arg9[%c0_18, %c0_19] : memref<2x128xf32, #tpu.memory_space<vmem>>, vector<1x128xf32>
    tpu.vector_store %arg9[%c0_18, %c0_19], %56 {strides = array<i32>} : memref<2x128xf32, #tpu.memory_space<vmem>>, vector<1x128xf32>,
    %c1_20 = arith.constant 1 : index
    %c0_21 = arith.constant 0 : index
    %58 = vector.load %arg9[%c1_20, %c0_21] : memref<2x128xf32, #tpu.memory_space<vmem>>, vector<1x128xf32>
    %59 = arith.mulf %48, %48 : vector<8x256xf32>
    %60 = vector.shape_cast %59 : vector<8x256xf32> to vector<1x8x256xf32>
    %cst_22 = arith.constant dense<0.000000e+00> : vector<1xf32>
    %61 = vector.multi_reduction <add>, %60, %cst_22 [1, 2] : vector<1x8x256xf32> to vector<1xf32>
    %62 = vector.shape_cast %61 : vector<1xf32> to vector<1x1x1xf32>
    %63 = vector.extract %62[0, 0, 0] : f32 from vector<1x1x1xf32>
    %64 = vector.broadcast %63 : f32 to vector<1x128xf32>
    %65 = arith.addf %58, %64 : vector<1x128xf32>
    %c1_23 = arith.constant 1 : index
    %c0_24 = arith.constant 0 : index
    %66 = vector.load %arg9[%c1_23, %c0_24] : memref<2x128xf32, #tpu.memory_space<vmem>>, vector<1x128xf32>
    tpu.vector_store %arg9[%c1_23, %c0_24], %65 {strides = array<i32>} : memref<2x128xf32, #tpu.memory_space<vmem>>, vector<1x128xf32>,
    %c256_i32 = arith.constant 256 : i32
    %67 = arith.muli %arg1, %c256_i32 : i32
    %68 = tpu.assume_multiple %67, 256 : i32
    %69 = vector.broadcast %1 : f32 to vector<8x256xf32>
    %70 = arith.mulf %69, %47 : vector<8x256xf32>
    %c0_25 = arith.constant 0 : index
    %c0_26 = arith.constant 0 : index
    %71 = arith.index_cast %68 : i32 to index
    %72 = vector.load %arg6[%c0_25, %c0_26, %71] : memref<1x8x256xf32, #tpu.memory_space<vmem>>, vector<1x8x256xf32>
    %73 = vector.shape_cast %72 : vector<1x8x256xf32> to vector<8x256xf32>
    %74 = vector.shape_cast %70 : vector<8x256xf32> to vector<1x8x256xf32>
    tpu.vector_store %arg6[%c0_25, %c0_26, %71], %74 {strides = array<i32>} : memref<1x8x256xf32, #tpu.memory_space<vmem>>, vector<1x8x256xf32>,
    %c0_27 = arith.constant 0 : index
    %c0_28 = arith.constant 0 : index
    %75 = arith.index_cast %68 : i32 to index
    %76 = vector.load %arg7[%c0_27, %c0_28, %75] : memref<1x8x256xf32, #tpu.memory_space<vmem>>, vector<1x8x256xf32>
    %77 = vector.shape_cast %76 : vector<1x8x256xf32> to vector<8x256xf32>
    %78 = vector.shape_cast %48 : vector<8x256xf32> to vector<1x8x256xf32>
    tpu.vector_store %arg7[%c0_27, %c0_28, %75], %78 {strides = array<i32>} : memref<1x8x256xf32, #tpu.memory_space<vmem>>, vector<1x8x256xf32>,
    %79 = vector.extract_strided_slice %6 {offsets = [0, 128], sizes = [2, 128], strides = [1, 1]} : vector<2x256xf32> to vector<2x128xf32>
    %c0_29 = arith.constant 0 : index
    %c0_30 = arith.constant 0 : index
    %80 = vector.load %arg8[%c0_29, %c0_30] : memref<2x128xf32, #tpu.memory_space<vmem>>, vector<2x128xf32>
    tpu.vector_store %arg8[%c0_29, %c0_30], %79 {strides = array<i32>} : memref<2x128xf32, #tpu.memory_space<vmem>>, vector<2x128xf32>,
    %c0_i32_31 = arith.constant 0 : i32
    %81 = arith.cmpi eq, %arg1, %c0_i32_31 : i32
    %82 = arith.extui %81 : i1 to i32
    %c0_i32_32 = arith.constant 0 : i32
    %83 = arith.cmpi ne, %82, %c0_i32_32 : i32
    scf.if %83 {
      %c0_33 = arith.constant 0 : index
      %c0_34 = arith.constant 0 : index
      %84 = vector.load %arg9[%c0_33, %c0_34] : memref<2x128xf32, #tpu.memory_space<vmem>>, vector<2x128xf32>
      %85 = vector.extract_strided_slice %84 {offsets = [0, 0], sizes = [1, 1], strides = [1, 1]} : vector<2x128xf32> to vector<1x1xf32>
      %cst_35 = arith.constant 4.8828125E-4 : f32
      %86 = vector.broadcast %cst_35 : f32 to vector<1x1xf32>
      %87 = arith.mulf %85, %86 : vector<1x1xf32>
      %88 = vector.extract_strided_slice %84 {offsets = [1, 0], sizes = [1, 1], strides = [1, 1]} : vector<2x128xf32> to vector<1x1xf32>
      %cst_36 = arith.constant 4.8828125E-4 : f32
      %89 = vector.broadcast %cst_36 : f32 to vector<1x1xf32>
      %90 = arith.mulf %88, %89 : vector<1x1xf32>
      %91 = vector.broadcast %0 : f32 to vector<1x1xf32>
      %92 = arith.mulf %90, %91 : vector<1x1xf32>
      %cst_37 = arith.constant 9.99999993E-9 : f32
      %93 = vector.broadcast %cst_37 : f32 to vector<1x1xf32>
      %94 = arith.addf %92, %93 : vector<1x1xf32>
      %95 = arith.divf %87, %94 : vector<1x1xf32>
      %96 = math.sqrt %95 : vector<1x1xf32>
      %97 = vector.broadcast %1 : f32 to vector<1x1xf32>
      %98 = arith.mulf %97, %96 : vector<1x1xf32>
      %c0_38 = arith.constant 0 : index
      %c0_39 = arith.constant 0 : index
      %c0_40 = arith.constant 0 : index
      %99 = vector.load %arg7[%c0_38, %c0_39, %c0_40] : memref<1x8x256xf32, #tpu.memory_space<vmem>>, vector<1x8x256xf32>
      %100 = vector.shape_cast %99 : vector<1x8x256xf32> to vector<8x256xf32>
      %101 = vector.broadcast %98 : vector<1x1xf32> to vector<8x256xf32>
      %102 = arith.mulf %101, %100 : vector<8x256xf32>
      %c0_41 = arith.constant 0 : index
      %c0_42 = arith.constant 0 : index
      %c0_43 = arith.constant 0 : index
      %103 = vector.load %arg6[%c0_41, %c0_42, %c0_43] : memref<1x8x256xf32, #tpu.memory_space<vmem>>, vector<1x8x256xf32>
      %104 = vector.shape_cast %103 : vector<1x8x256xf32> to vector<8x256xf32>
      %105 = arith.addf %104, %102 : vector<8x256xf32>
      %c0_44 = arith.constant 0 : index
      %c0_45 = arith.constant 0 : index
      %c0_46 = arith.constant 0 : index
      %106 = vector.load %arg5[%c0_44, %c0_45, %c0_46] : memref<1x8x256xf32, #tpu.memory_space<vmem>>, vector<1x8x256xf32>
      %107 = vector.shape_cast %106 : vector<1x8x256xf32> to vector<8x256xf32>
      %108 = vector.shape_cast %105 : vector<8x256xf32> to vector<1x8x256xf32>
      tpu.vector_store %arg5[%c0_44, %c0_45, %c0_46], %108 {strides = array<i32>} : memref<1x8x256xf32, #tpu.memory_space<vmem>>, vector<1x8x256xf32>,
      %c0_47 = arith.constant 0 : index
      %c0_48 = arith.constant 0 : index
      %c0_49 = arith.constant 0 : index
      %109 = vector.load %arg7[%c0_47, %c0_48, %c0_49] : memref<1x8x256xf32, #tpu.memory_space<vmem>>, vector<1x8x256xf32>
      %110 = vector.shape_cast %109 : vector<1x8x256xf32> to vector<8x256xf32>
      %111 = vector.shape_cast %102 : vector<8x256xf32> to vector<1x8x256xf32>
      tpu.vector_store %arg7[%c0_47, %c0_48, %c0_49], %111 {strides = array<i32>} : memref<1x8x256xf32, #tpu.memory_space<vmem>>, vector<1x8x256xf32>,
    } else {
    }
    return
  }
  func.func @transform_0(%arg0: i32, %arg1: i32) -> i32 {
    %c0_i32 = arith.constant 0 : i32
    %c0_i32_0 = arith.constant 0 : i32
    return %c0_i32 : i32
  }
  func.func @transform_1(%arg0: i32, %arg1: i32) -> (i32, i32, i32, i32) {
    %c0_i32 = arith.constant 0 : i32
    %c0_i32_0 = arith.constant 0 : i32
    %c0_i32_1 = arith.constant 0 : i32
    %c0_i32_2 = arith.constant 0 : i32
    return %arg0, %c0_i32, %c0_i32_0, %c0_i32_1 : i32, i32, i32, i32
  }
  func.func @transform_2(%arg0: i32, %arg1: i32) -> (i32, i32, i32) {
    %c0_i32 = arith.constant 0 : i32
    %c0_i32_0 = arith.constant 0 : i32
    return %arg0, %c0_i32, %arg1 : i32, i32, i32
  }
  func.func @transform_3(%arg0: i32, %arg1: i32) -> (i32, i32, i32) {
    %c0_i32 = arith.constant 0 : i32
    %c0_i32_0 = arith.constant 0 : i32
    %c0_i32_1 = arith.constant 0 : i32
    return %arg0, %c0_i32, %c0_i32_0 : i32, i32, i32
  }
  func.func @transform_4(%arg0: i32, %arg1: i32) -> (i32, i32, i32) {
    %c0_i32 = arith.constant 0 : i32
    %c0_i32_0 = arith.constant 0 : i32
    %c0_i32_1 = arith.constant 0 : i32
    return %arg0, %c0_i32, %c0_i32_0 : i32, i32, i32
  }
  func.func @transform_5(%arg0: i32, %arg1: i32) -> (i32, i32, i32) {
    %c0_i32 = arith.constant 0 : i32
    %c0_i32_0 = arith.constant 0 : i32
    %c0_i32_1 = arith.constant 0 : i32
    return %arg0, %c0_i32, %c0_i32_0 : i32, i32, i32
  }
}

</mosaic_0001>

<llo_original>
// kernel: _augment_pallas.1
$region0: #{_augment_pallas.1}
  #allocation0 [shape = 'u32[]', space=smem, size = 0x4, offset = 0x4, fixed_abs, tag = 'smem constant byte address 0x4 - core index']
  #allocation1 [shape = 'u32[144,128]{1,0:T(1,128)}', space=vmem, size = 0x12000, scoped, tag = 'internal scratch']
  #allocation2 [shape = 'f32[2,128]{1,0:T(2,128)}', space=vmem, size = 0x400, scoped, tag = 'scratch operand']
  #allocation3 [shape = 'f32[2,128]{1,0:T(2,128)}', space=vmem, size = 0x400, scoped, tag = 'scratch operand']
  %s0 = inlined_call_operand.vmem [shape: f32[2], index: 0, kind: input, shape index: {}]
  %s1 = inlined_call_operand.vmem [shape: f32[2,2,8,16], index: 1, kind: input, shape index: {}]
  %s2 = inlined_call_operand.vmem [shape: f32[2,2,256], index: 2, kind: input, shape index: {}]
  %s3 = inlined_call_operand.hbm [shape: f32[2,8,256], index: 3, kind: output, shape index: {0}]
  %s4 = inlined_call_operand.hbm [shape: f32[2,8,256], index: 4, kind: output, shape index: {1}]
  %s5 = inlined_call_operand.hbm [shape: f32[2,8,256], index: 5, kind: output, shape index: {2}]
  %6 = xla_tuple %s3, %s4, %s5
  %s7 = sld [smem:[#allocation0]]
  $region73: #{_augment_pallas.1} parent=0
    _
  %s9 = ssub.s32 1, %s7
  %s10 = scalar_select 0, %s9, %s7
  $region1: #{_augment_pallas.1} parent=0
    #allocation4 [shape = 'u8[512]{0}', space=smem, size = 0x200, scoped, tag = 'input window, operand 0, single buffered']
    #allocation5 [shape = 's32[2]{0}', space=sflag, size = 0x8, scoped, tag = 'scoped memory for _augment_pallas.1']
    #allocation6 [shape = 's32[2]{0}', space=sflag, size = 0x8, scoped, tag = 'scoped memory for _augment_pallas.1']
    #allocation7 [shape = 'u8[16384]{0}', space=vmem, size = 0x4000, scoped, tag = 'output window, operand 0']
    #allocation8 [shape = 'u8[16384]{0}', space=vmem, size = 0x4000, scoped, tag = 'output window, operand 1']
    #allocation9 [shape = 's32[2]{0}', space=sflag, size = 0x8, scoped, tag = 'scoped memory for _augment_pallas.1']
    #allocation10 [shape = 'u8[16384]{0}', space=vmem, size = 0x4000, scoped, tag = 'output window, operand 2']
    %11 = vsyncpa [#allocation6], 0
    %12 = vsyncpa [#allocation5], 0
    %s13 = scalar_lea.sflag [#allocation5], 1
    %14 = vsyncpa %s13, 0
    %15 = vsyncpa [#allocation9], 0
    %s16 = scalar_lea.sflag [#allocation9], 1
    %17 = vsyncpa %s16, 0
    loop: start=0, step=1, limit=4
    $region2: #{_augment_pallas.1} parent=1 // loop_pre_header
      _
    $region3: #{_augment_pallas.1} parent=1 // loop_header
      %s19 = sphi 0, %s23
      %p20 = scmp.ge.s32.totalorder %s19, 4
      %s26 = sphi 0, %s38
      %s27 = sphi 0, %s34
      %s28 = sphi 0, %s26
      %s29 = sphi 0, %s27
      %s30 = sphi 0, %s28
      %s31 = sphi 0, %s29
      %s39 = sphi 0, %s39
      %s41 = sphi 0, %s39
      %s42 = sphi 0, %s41
      %s56 = sphi 0, %s42
      %s62 = sphi 0, %s64
      %s65 = sphi 0, %s62
      %s66 = sphi 0, %s65
      %s82 = sphi 0, %s66
      %s90 = sphi 0, %s92
      %s93 = sphi 0, %s90
      %s94 = sphi 0, %s93
      %s110 = sphi 0, %s94
      %s116 = sphi 0, %s118
      %s119 = sphi 0, %s116
      %s120 = sphi 0, %s119
      %s136 = sphi 0, %s120
      %s142 = sphi 0, %s144
      %s145 = sphi 0, %s142
      %s146 = sphi 0, %s145
      %s162 = sphi 0, %s146
      %s168 = sphi 0, %s170
      %s171 = sphi 0, %s168
      %s172 = sphi 0, %s171
      %s188 = sphi 0, %s172
    $region4: #{_augment_pallas.1} parent=1 // loop_header_branch
      %22 = sbr.rel (%p20) target = $region8
    $region5: #{_augment_pallas.1} parent=1 // loop_body
      %s24 = ssub.s32 %s19, 1
      %s25 = ssub.s32 %s19, 2
      %s32 = sadd.s32 1, %s27
      %p33 = scmp.ge.s32.totalorder %s32, 1
      %s34 = scalar_select %p33, 0, %s32
      %s35 = sadd.s32 1, %s26
      %s36 = scalar_select %p33, %s35, %s26
      %p37 = scmp.ge.s32.totalorder %s36, 2
      %s38 = scalar_select %p37, 0, %s36
      %s40 = sadd.s32 %s39, 1
      %p43 = scmp.eq.s32.totalorder %s19, 1
      %p44 = scmp.ne.s32.totalorder %s39, %s41
      %p45 = scmp.eq.s32.totalorder %s19, 0
      %p46 = por %p44, %p45
      %p47 = scmp.ne.s32.totalorder %s39, %s41
      %p48 = scmp.eq.s32.totalorder %s24, 1
      %p49 = por %p47, %p48
      %p50 = scmp.ne.s32.totalorder %s41, %s42
      %p51 = scmp.eq.s32.totalorder %s24, 0
      %p52 = por %p50, %p51
      %p53 = scmp.ne.s32.totalorder %s41, %s42
      %p54 = scmp.eq.s32.totalorder %s25, 1
      %p55 = por %p53, %p54
      %p57 = scmp.ne.s32.totalorder %s42, %s56
      %p58 = scmp.eq.s32.totalorder %s25, 0
      %p59 = por %p57, %p58
      %s60 = ssub.s32 %s26, %s38
      %p61 = scmp.eq.s32.totalorder %s60, 0
      %s63 = sadd.s32 %s62, 1
      %s64 = scalar_select %p61, %s62, %s63
      %p67 = pneg %p61
      %p68 = scmp.eq.s32.totalorder %s19, 1
      %p69 = por %p67, %p68
      %p70 = scmp.ne.s32.totalorder %s62, %s65
      %p71 = scmp.eq.s32.totalorder %s19, 0
      %p72 = por %p70, %p71
      %p73 = scmp.ne.s32.totalorder %s62, %s65
      %p74 = scmp.eq.s32.totalorder %s24, 1
      %p75 = por %p73, %p74
      %p76 = scmp.ne.s32.totalorder %s65, %s66
      %p77 = scmp.eq.s32.totalorder %s24, 0
      %p78 = por %p76, %p77
      %p79 = scmp.ne.s32.totalorder %s65, %s66
      %p80 = scmp.eq.s32.totalorder %s25, 1
      %p81 = por %p79, %p80
      %p83 = scmp.ne.s32.totalorder %s66, %s82
      %p84 = scmp.eq.s32.totalorder %s25, 0
      %p85 = por %p83, %p84
      %s86 = ssub.s32 %s26, %s38
      %s87 = ssub.s32 %s27, %s34
      %s88 = sor.u32 %s86, %s87
      %p89 = scmp.eq.s32.totalorder %s88, 0
      %s91 = sadd.s32 %s90, 1
      %s92 = scalar_select %p89, %s90, %s91
      %p95 = pneg %p89
      %p96 = scmp.eq.s32.totalorder %s19, 1
      %p97 = por %p95, %p96
      %p98 = scmp.ne.s32.totalorder %s90, %s93
      %p99 = scmp.eq.s32.totalorder %s19, 0
      %p100 = por %p98, %p99
      %p101 = scmp.ne.s32.totalorder %s90, %s93
      %p102 = scmp.eq.s32.totalorder %s24, 1
      %p103 = por %p101, %p102
      %p104 = scmp.ne.s32.totalorder %s93, %s94
      %p105 = scmp.eq.s32.totalorder %s24, 0
      %p106 = por %p104, %p105
      %p107 = scmp.ne.s32.totalorder %s93, %s94
      %p108 = scmp.eq.s32.totalorder %s25, 1
      %p109 = por %p107, %p108
      %p111 = scmp.ne.s32.totalorder %s94, %s110
      %p112 = scmp.eq.s32.totalorder %s25, 0
      %p113 = por %p111, %p112
      %s114 = ssub.s32 %s26, %s38
      %p115 = scmp.eq.s32.totalorder %s114, 0
      %s117 = sadd.s32 %s116, 1
      %s118 = scalar_select %p115, %s116, %s117
      %p121 = pneg %p115
      %p122 = scmp.eq.s32.totalorder %s19, 1
      %p123 = por %p121, %p122
      %p124 = scmp.ne.s32.totalorder %s116, %s119
      %p125 = scmp.eq.s32.totalorder %s19, 0
      %p126 = por %p124, %p125
      %p127 = scmp.ne.s32.totalorder %s116, %s119
      %p128 = scmp.eq.s32.totalorder %s24, 1
      %p129 = por %p127, %p128
      %p130 = scmp.ne.s32.totalorder %s119, %s120
      %p131 = scmp.eq.s32.totalorder %s24, 0
      %p132 = por %p130, %p131
      %p133 = scmp.ne.s32.totalorder %s119, %s120
      %p134 = scmp.eq.s32.totalorder %s25, 1
      %p135 = por %p133, %p134
      %p137 = scmp.ne.s32.totalorder %s120, %s136
      %p138 = scmp.eq.s32.totalorder %s25, 0
      %p139 = por %p137, %p138
      %s140 = ssub.s32 %s26, %s38
      %p141 = scmp.eq.s32.totalorder %s140, 0
      %s143 = sadd.s32 %s142, 1
      %s144 = scalar_select %p141, %s142, %s143
      %p147 = pneg %p141
      %p148 = scmp.eq.s32.totalorder %s19, 1
      %p149 = por %p147, %p148
      %p150 = scmp.ne.s32.totalorder %s142, %s145
      %p151 = scmp.eq.s32.totalorder %s19, 0
      %p152 = por %p150, %p151
      %p153 = scmp.ne.s32.totalorder %s142, %s145
      %p154 = scmp.eq.s32.totalorder %s24, 1
      %p155 = por %p153, %p154
      %p156 = scmp.ne.s32.totalorder %s145, %s146
      %p157 = scmp.eq.s32.totalorder %s24, 0
      %p158 = por %p156, %p157
      %p159 = scmp.ne.s32.totalorder %s145, %s146
      %p160 = scmp.eq.s32.totalorder %s25, 1
      %p161 = por %p159, %p160
      %p163 = scmp.ne.s32.totalorder %s146, %s162
      %p164 = scmp.eq.s32.totalorder %s25, 0
      %p165 = por %p163, %p164
      %s166 = ssub.s32 %s26, %s38
      %p167 = scmp.eq.s32.totalorder %s166, 0
      %s169 = sadd.s32 %s168, 1
      %s170 = scalar_select %p167, %s168, %s169
      %p173 = pneg %p167
      %p174 = scmp.eq.s32.totalorder %s19, 1
      %p175 = por %p173, %p174
      %p176 = scmp.ne.s32.totalorder %s168, %s171
      %p177 = scmp.eq.s32.totalorder %s19, 0
      %p178 = por %p176, %p177
      %p179 = scmp.ne.s32.totalorder %s168, %s171
      %p180 = scmp.eq.s32.totalorder %s24, 1
      %p181 = por %p179, %p180
      %p182 = scmp.ne.s32.totalorder %s171, %s172
      %p183 = scmp.eq.s32.totalorder %s24, 0
      %p184 = por %p182, %p183
      %p185 = scmp.ne.s32.totalorder %s171, %s172
      %p186 = scmp.eq.s32.totalorder %s25, 1
      %p187 = por %p185, %p186
      %p189 = scmp.ne.s32.totalorder %s172, %s188
      %p190 = scmp.eq.s32.totalorder %s25, 0
      %p191 = por %p189, %p190
      %p192 = scmp.le.s32.totalorder 1, %s19
      %p193 = scmp.lt.s32.totalorder %s19, 3
      %p194 = pnand %p192, %p193
      %p195 = pneg %p194
      // Predicated region
      $region9: #{_augment_pallas.1} parent=5 // pred_check
        _
      $region10: #{_augment_pallas.1} parent=5 // pred_check_branch
        %197 = sbr.rel (%p194) target = $region12
      $region11: #{_augment_pallas.1} parent=5 // pred_region
        %s198 = ssub.s32 %s19, 1
        // Predicated region
        $region13: #{_augment_pallas.1} parent=11 // pred_check
          %p199 = pneg %p52
        $region14: #{_augment_pallas.1} parent=11 // pred_check_branch
          %201 = sbr.rel (%p199) target = $region16
        $region15: #{_augment_pallas.1} parent=11 // pred_region
          %s203 = ssub.s32 16, 16
          %204 = vsyncadd [#allocation6], %s203
          %s206 = sshll.u32 %s0, 4
          %s207 = int_to_ptr.vmem [resolvable:$true] %s206
          %209 = dma.vmem_to_smem %s207, 16, [#allocation4], [#allocation6]
        $region16: #{_augment_pallas.1} parent=11 // pred_fallthru
          _
      $region12: #{_augment_pallas.1} parent=5 // pred_fallthru
        _
      %p210 = scmp.lt.s32.totalorder %s19, 2
      // Predicated region
      $region17: #{_augment_pallas.1} parent=5 // pred_check
        %p211 = pneg %p210
      $region18: #{_augment_pallas.1} parent=5 // pred_check_branch
        %213 = sbr.rel (%p211) target = $region20
      $region19: #{_augment_pallas.1} parent=5 // pred_region
        // Predicated region
        $region21: #{_augment_pallas.1} parent=19 // pred_check
          %p214 = pneg %p72
        $region22: #{_augment_pallas.1} parent=19 // pred_check_branch
          %216 = sbr.rel (%p214) target = $region24
        $region23: #{_augment_pallas.1} parent=19 // pred_region
          %p217 = scmp.lt.s32.totalorder %s26, 1
          %s218 = scalar_select %p217, %s26, 1
          %s219 = smul.addr %s218, 2
          %s220 = smul.addr %s219, 8
          %s221 = scalar_lea.vmem %s1, %s220
        $region24: #{_augment_pallas.1} parent=19 // pred_fallthru
          _
        // Predicated region
        $region25: #{_augment_pallas.1} parent=19 // pred_check
          %p222 = pneg %p100
        $region26: #{_augment_pallas.1} parent=19 // pred_check_branch
          %224 = sbr.rel (%p222) target = $region28
        $region27: #{_augment_pallas.1} parent=19 // pred_region
          %s225 = smul.u32 2, %s27
          %p226 = scmp.lt.s32.totalorder %s26, 1
          %s227 = scalar_select %p226, %s26, 1
          %p228 = scmp.lt.s32.totalorder %s225, 1
          %s229 = scalar_select %p228, %s225, 1
          %s230 = smul.addr %s227, 2
          %s231 = sadd.s32 %s229, %s230
          %s232 = smul.addr %s231, 2
          %s233 = scalar_lea.vmem %s2, %s232
          %s234 = smul.u32 2, %s27
        $region28: #{_augment_pallas.1} parent=19 // pred_fallthru
          _
      $region20: #{_augment_pallas.1} parent=5 // pred_fallthru
        _
      %p235 = scmp.le.s32.totalorder 1, %s19
      %p236 = scmp.lt.s32.totalorder %s19, 3
      %p237 = pnand %p235, %p236
      %p238 = pneg %p237
      // Predicated region
      $region29: #{_augment_pallas.1} parent=5 // pred_check
        _
      $region30: #{_augment_pallas.1} parent=5 // pred_check_branch
        %240 = sbr.rel (%p237) target = $region32
      $region31: #{_augment_pallas.1} parent=5 // pred_region
        %s241 = ssub.s32 %s19, 1
        // Predicated region
        $region33: #{_augment_pallas.1} parent=31 // pred_check
          %p242 = pneg %p52
        $region34: #{_augment_pallas.1} parent=31 // pred_check_branch
          %244 = sbr.rel (%p242) target = $region36
        $region35: #{_augment_pallas.1} parent=31 // pred_region
          %245 = dma.done [#allocation6], 16
        $region36: #{_augment_pallas.1} parent=31 // pred_fallthru
          _
        %246 = sfence
        %p247 = pneg %p52
        %p248 = pneg %p49
        %p249 = scmp.lt.s32.totalorder %s28, 1
        %s250 = scalar_select %p249, %s28, 1
        %s251 = smul.addr %s250, 2
        %s252 = smul.addr %s251, 8
        %s253 = scalar_lea.vmem %s1, %s252
        %p254 = pneg %p78
        %p255 = pneg %p75
        %s256 = smul.u32 2, %s29
        %p257 = scmp.lt.s32.totalorder %s28, 1
        %s258 = scalar_select %p257, %s28, 1
        %p259 = scmp.lt.s32.totalorder %s256, 1
        %s260 = scalar_select %p259, %s256, 1
        %s261 = smul.addr %s258, 2
        %s262 = sadd.s32 %s260, %s261
        %s263 = smul.addr %s262, 2
        %s264 = scalar_lea.vmem %s2, %s263
        %p265 = pneg %p106
        %p266 = pneg %p103
        %p267 = pneg %p132
        %p268 = pneg %p129
        %s269 = sand.u32 %s119, 1
        %s270 = scalar_lea.sflag [#allocation5], %s269
        %s271 = sand.u32 %s119, 1
        %s272 = smul.addr %s271, 16
        %s273 = scalar_lea.vmem [#allocation7], %s272
        %p274 = pneg %p158
        %p275 = pneg %p155
        %s276 = sand.u32 %s24, 1
        %s277 = scalar_lea.sflag [#allocation9], %s276
        %s278 = sand.u32 %s145, 1
        %s279 = smul.addr %s278, 16
        %s280 = scalar_lea.vmem [#allocation8], %s279
        %p281 = pneg %p184
        %p282 = pneg %p181
        %s283 = sand.u32 %s24, 1
        %s284 = scalar_lea.sflag [#allocation9], %s283
        %s285 = sand.u32 %s171, 1
        %s286 = smul.addr %s285, 16
        %s287 = scalar_lea.vmem [#allocation10], %s286
        %p288 = scmp.lt.s32.totalorder %s28, 1
        %s289 = scalar_select %p288, %s28, 1
        %s290 = smul.addr %s289, 2
        %s291 = smul.addr %s290, 8
        %s292 = scalar_lea.vmem %s1, %s291
        %s293 = smul.u32 2, %s29
        %p294 = scmp.lt.s32.totalorder %s28, 1
        %s295 = scalar_select %p294, %s28, 1
        %p296 = scmp.lt.s32.totalorder %s293, 1
        %s297 = scalar_select %p296, %s293, 1
        %s298 = smul.addr %s295, 2
        %s299 = sadd.s32 %s297, %s298
        %s300 = smul.addr %s299, 2
        %s301 = scalar_lea.vmem %s2, %s300
        %s302 = smul.u32 2, %s29
        %s303 = sld [smem:[#allocation4]]
        %s304 = sld [smem:[#allocation4 + $0x1]]
        %p305 = scmp.eq.s32.totalorder %s29, 0
        // Predicated region
        $region37: #{_augment_pallas.1} parent=31 // pred_check
          %p306 = pneg %p305
        $region38: #{_augment_pallas.1} parent=31 // pred_check_branch
          %308 = sbr.rel (%p306) target = $region40
        $region39: #{_augment_pallas.1} parent=31 // pred_region
          %309 = vst [vmem:[#allocation2] sm:$0x3] 0.0
          %310 = vst [vmem:[#allocation3] sm:$0x3] 0.0
        $region40: #{_augment_pallas.1} parent=31 // pred_fallthru
          _
        %v311 = vld [vmem:[%s301] sm:$0xf]
        %v312 = vld [vmem:[#allocation2] sm:$0x3]
        %v315 = vunpack.c.l.s4 1983009808
        %v316 = vunpack.c.0.s8 %v315
        %v317 = vlaneseq
        %v318 = vshrl.u32 %v317, 7
        %v319 = vsub.s32 %v316, %v318
        %v320 = vrot.slane %v311, %v319
        %v321 = vcombine.high %v320, %v320
        %v325 = vrot.slane %v312, 7
        %v326 = vrot.slane %v320, 7
        %v327 = vrot.slane %v321, 7
        %328 = vrot.lane.b32.xlu0 %v325, 1
        %v329 = vpop.permute.xlu0 %328
        %330 = vrot.lane.b32.xlu0 %v326, 1
        %v331 = vpop.permute.xlu0 %330
        %332 = vrot.lane.b32.xlu0 %v327, 1
        %v333 = vpop.permute.xlu0 %332
        %vm334 = vcmask 7168
        %v335 = vsel %vm334, %v329, %v331
        %v336 = vsel %vm334, %v331, %v333
        %v339 = vrot.slane %v312, 6
        %v340 = vrot.slane %v320, 6
        %v341 = vrot.slane %v321, 6
        %342 = vrot.lane.b32.xlu0 %v339, 2
        %v343 = vpop.permute.xlu0 %342
        %344 = vrot.lane.b32.xlu0 %v340, 2
        %v345 = vpop.permute.xlu0 %344
        %346 = vrot.lane.b32.xlu0 %v341, 2
        %v347 = vpop.permute.xlu0 %346
        %vm348 = vcmask 15360
        %v349 = vsel %vm348, %v343, %v345
        %v350 = vsel %vm348, %v345, %v347
        %v353 = vrot.slane %v312, 5
        %v354 = vrot.slane %v320, 5
        %v355 = vrot.slane %v321, 5
        %356 = vrot.lane.b32.xlu0 %v353, 3
        %v357 = vpop.permute.xlu0 %356
        %358 = vrot.lane.b32.xlu0 %v354, 3
        %v359 = vpop.permute.xlu0 %358
        %360 = vrot.lane.b32.xlu0 %v355, 3
        %v361 = vpop.permute.xlu0 %360
        %vm362 = vcmask 23552
        %v363 = vsel %vm362, %v357, %v359
        %v364 = vsel %vm362, %v359, %v361
        %v367 = vrot.slane %v312, 4
        %v368 = vrot.slane %v320, 4
        %v369 = vrot.slane %v321, 4
        %370 = vrot.lane.b32.xlu0 %v367, 4
        %v371 = vpop.permute.xlu0 %370
        %372 = vrot.lane.b32.xlu0 %v368, 4
        %v373 = vpop.permute.xlu0 %372
        %374 = vrot.lane.b32.xlu0 %v369, 4
        %v375 = vpop.permute.xlu0 %374
        %vm376 = vcmask 31744
        %v377 = vsel %vm376, %v371, %v373
        %v378 = vsel %vm376, %v373, %v375
        %v381 = vrot.slane %v312, 3
        %v382 = vrot.slane %v320, 3
        %v383 = vrot.slane %v321, 3
        %384 = vrot.lane.b32.xlu0 %v381, 5
        %v385 = vpop.permute.xlu0 %384
        %386 = vrot.lane.b32.xlu0 %v382, 5
        %v387 = vpop.permute.xlu0 %386
        %388 = vrot.lane.b32.xlu0 %v383, 5
        %v389 = vpop.permute.xlu0 %388
        %vm390 = vcmask 39936
        %v391 = vsel %vm390, %v385, %v387
        %v392 = vsel %vm390, %v387, %v389
        %v395 = vrot.slane %v312, 2
        %v396 = vrot.slane %v320, 2
        %v397 = vrot.slane %v321, 2
        %398 = vrot.lane.b32.xlu0 %v395, 6
        %v399 = vpop.permute.xlu0 %398
        %400 = vrot.lane.b32.xlu0 %v396, 6
        %v401 = vpop.permute.xlu0 %400
        %402 = vrot.lane.b32.xlu0 %v397, 6
        %v403 = vpop.permute.xlu0 %402
        %vm404 = vcmask 48128
        %v405 = vsel %vm404, %v399, %v401
        %v406 = vsel %vm404, %v401, %v403
        %v409 = vrot.slane %v312, 1
        %v410 = vrot.slane %v320, 1
        %v411 = vrot.slane %v321, 1
        %412 = vrot.lane.b32.xlu0 %v409, 7
        %v413 = vpop.permute.xlu0 %412
        %414 = vrot.lane.b32.xlu0 %v410, 7
        %v415 = vpop.permute.xlu0 %414
        %416 = vrot.lane.b32.xlu0 %v411, 7
        %v417 = vpop.permute.xlu0 %416
        %vm418 = vcmask 56320
        %v419 = vsel %vm418, %v413, %v415
        %v420 = vsel %vm418, %v415, %v417
        %423 = vrot.lane.b32.xlu0 %v312, 8
        %v424 = vpop.permute.xlu0 %423
        %425 = vrot.lane.b32.xlu0 %v320, 8
        %v426 = vpop.permute.xlu0 %425
        %427 = vrot.lane.b32.xlu0 %v321, 8
        %v428 = vpop.permute.xlu0 %427
        %vm429 = vcmask 64512
        %v430 = vsel %vm429, %v424, %v426
        %v431 = vsel %vm429, %v426, %v428
        %434 = vrot.lane.b32.xlu0 %v325, 9
        %v435 = vpop.permute.xlu0 %434
        %436 = vrot.lane.b32.xlu0 %v326, 9
        %v437 = vpop.permute.xlu0 %436
        %438 = vrot.lane.b32.xlu0 %v327, 9
        %v439 = vpop.permute.xlu0 %438
        %vm440 = vcmask 72704
        %v441 = vsel %vm440, %v435, %v437
        %v442 = vsel %vm440, %v437, %v439
        %445 = vrot.lane.b32.xlu0 %v339, 10
        %v446 = vpop.permute.xlu0 %445
        %447 = vrot.lane.b32.xlu0 %v340, 10
        %v448 = vpop.permute.xlu0 %447
        %449 = vrot.lane.b32.xlu0 %v341, 10
        %v450 = vpop.permute.xlu0 %449
        %vm451 = vcmask 80896
        %v452 = vsel %vm451, %v446, %v448
        %v453 = vsel %vm451, %v448, %v450
        %456 = vrot.lane.b32.xlu0 %v353, 11
        %v457 = vpop.permute.xlu0 %456
        %458 = vrot.lane.b32.xlu0 %v354, 11
        %v459 = vpop.permute.xlu0 %458
        %460 = vrot.lane.b32.xlu0 %v355, 11
        %v461 = vpop.permute.xlu0 %460
        %vm462 = vcmask 89088
        %v463 = vsel %vm462, %v457, %v459
        %v464 = vsel %vm462, %v459, %v461
        %467 = vrot.lane.b32.xlu0 %v367, 12
        %v468 = vpop.permute.xlu0 %467
        %469 = vrot.lane.b32.xlu0 %v368, 12
        %v470 = vpop.permute.xlu0 %469
        %471 = vrot.lane.b32.xlu0 %v369, 12
        %v472 = vpop.permute.xlu0 %471
        %vm473 = vcmask 97280
        %v474 = vsel %vm473, %v468, %v470
        %v475 = vsel %vm473, %v470, %v472
        %478 = vrot.lane.b32.xlu0 %v381, 13
        %v479 = vpop.permute.xlu0 %478
        %480 = vrot.lane.b32.xlu0 %v382, 13
        %v481 = vpop.permute.xlu0 %480
        %482 = vrot.lane.b32.xlu0 %v383, 13
        %v483 = vpop.permute.xlu0 %482
        %vm484 = vcmask 105472
        %v485 = vsel %vm484, %v479, %v481
        %v486 = vsel %vm484, %v481, %v483
        %489 = vrot.lane.b32.xlu0 %v395, 14
        %v490 = vpop.permute.xlu0 %489
        %491 = vrot.lane.b32.xlu0 %v396, 14
        %v492 = vpop.permute.xlu0 %491
        %493 = vrot.lane.b32.xlu0 %v397, 14
        %v494 = vpop.permute.xlu0 %493
        %vm495 = vcmask 113664
        %v496 = vsel %vm495, %v490, %v492
        %v497 = vsel %vm495, %v492, %v494
        %500 = vrot.lane.b32.xlu0 %v409, 15
        %v501 = vpop.permute.xlu0 %500
        %502 = vrot.lane.b32.xlu0 %v410, 15
        %v503 = vpop.permute.xlu0 %502
        %504 = vrot.lane.b32.xlu0 %v411, 15
        %v505 = vpop.permute.xlu0 %504
        %vm506 = vcmask 121856
        %v507 = vsel %vm506, %v501, %v503
        %v508 = vsel %vm506, %v503, %v505
        %vm511 = vcmask 1040384
        %v512 = vsel %vm511, %v320, %v335
        %v513 = vsel %vm511, %v321, %v336
        %vm514 = vcmask 1041408
        %v515 = vsel %vm514, %v512, %v349
        %v516 = vsel %vm514, %v513, %v350
        %vm517 = vcmask 1042432
        %v518 = vsel %vm517, %v515, %v363
        %v519 = vsel %vm517, %v516, %v364
        %vm520 = vcmask 1043456
        %v521 = vsel %vm520, %v518, %v377
        %v522 = vsel %vm520, %v519, %v378
        %vm523 = vcmask 1044480
        %v524 = vsel %vm523, %v521, %v391
        %v525 = vsel %vm523, %v522, %v392
        %vm526 = vcmask 1045504
        %v527 = vsel %vm526, %v524, %v405
        %v528 = vsel %vm526, %v525, %v406
        %vm529 = vcmask 1046528
        %v530 = vsel %vm529, %v527, %v419
        %v531 = vsel %vm529, %v528, %v420
        %v532 = vsel %vm511, %v430, %v441
        %v533 = vsel %vm511, %v431, %v442
        %v534 = vsel %vm514, %v532, %v452
        %v535 = vsel %vm514, %v533, %v453
        %v536 = vsel %vm517, %v534, %v463
        %v537 = vsel %vm517, %v535, %v464
        %v538 = vsel %vm520, %v536, %v474
        %v539 = vsel %vm520, %v537, %v475
        %v540 = vsel %vm523, %v538, %v485
        %v541 = vsel %vm523, %v539, %v486
        %v542 = vsel %vm526, %v540, %v496
        %v543 = vsel %vm526, %v541, %v497
        %v544 = vsel %vm529, %v542, %v507
        %v545 = vsel %vm529, %v543, %v508
        %548 = vrot.lane.b32.xlu0 %v312, 1
        %v549 = vpop.permute.xlu0 %548
        %550 = vrot.lane.b32.xlu0 %v320, 1
        %v551 = vpop.permute.xlu0 %550
        %552 = vrot.lane.b32.xlu0 %v321, 1
        %v553 = vpop.permute.xlu0 %552
        %v554 = vsel %vm334, %v549, %v551
        %v555 = vsel %vm334, %v551, %v553
        %558 = vrot.lane.b32.xlu0 %v325, 2
        %v559 = vpop.permute.xlu0 %558
        %560 = vrot.lane.b32.xlu0 %v326, 2
        %v561 = vpop.permute.xlu0 %560
        %562 = vrot.lane.b32.xlu0 %v327, 2
        %v563 = vpop.permute.xlu0 %562
        %v564 = vsel %vm348, %v559, %v561
        %v565 = vsel %vm348, %v561, %v563
        %568 = vrot.lane.b32.xlu0 %v339, 3
        %v569 = vpop.permute.xlu0 %568
        %570 = vrot.lane.b32.xlu0 %v340, 3
        %v571 = vpop.permute.xlu0 %570
        %572 = vrot.lane.b32.xlu0 %v341, 3
        %v573 = vpop.permute.xlu0 %572
        %v574 = vsel %vm362, %v569, %v571
        %v575 = vsel %vm362, %v571, %v573
        %578 = vrot.lane.b32.xlu0 %v353, 4
        %v579 = vpop.permute.xlu0 %578
        %580 = vrot.lane.b32.xlu0 %v354, 4
        %v581 = vpop.permute.xlu0 %580
        %582 = vrot.lane.b32.xlu0 %v355, 4
        %v583 = vpop.permute.xlu0 %582
        %v584 = vsel %vm376, %v579, %v581
        %v585 = vsel %vm376, %v581, %v583
        %588 = vrot.lane.b32.xlu0 %v367, 5
        %v589 = vpop.permute.xlu0 %588
        %590 = vrot.lane.b32.xlu0 %v368, 5
        %v591 = vpop.permute.xlu0 %590
        %592 = vrot.lane.b32.xlu0 %v369, 5
        %v593 = vpop.permute.xlu0 %592
        %v594 = vsel %vm390, %v589, %v591
        %v595 = vsel %vm390, %v591, %v593
        %598 = vrot.lane.b32.xlu0 %v381, 6
        %v599 = vpop.permute.xlu0 %598
        %600 = vrot.lane.b32.xlu0 %v382, 6
        %v601 = vpop.permute.xlu0 %600
        %602 = vrot.lane.b32.xlu0 %v383, 6
        %v603 = vpop.permute.xlu0 %602
        %v604 = vsel %vm404, %v599, %v601
        %v605 = vsel %vm404, %v601, %v603
        %608 = vrot.lane.b32.xlu0 %v395, 7
        %v609 = vpop.permute.xlu0 %608
        %610 = vrot.lane.b32.xlu0 %v396, 7
        %v611 = vpop.permute.xlu0 %610
        %612 = vrot.lane.b32.xlu0 %v397, 7
        %v613 = vpop.permute.xlu0 %612
        %v614 = vsel %vm418, %v609, %v611
        %v615 = vsel %vm418, %v611, %v613
        %618 = vrot.lane.b32.xlu0 %v409, 8
        %v619 = vpop.permute.xlu0 %618
        %620 = vrot.lane.b32.xlu0 %v410, 8
        %v621 = vpop.permute.xlu0 %620
        %622 = vrot.lane.b32.xlu0 %v411, 8
        %v623 = vpop.permute.xlu0 %622
        %v624 = vsel %vm429, %v619, %v621
        %v625 = vsel %vm429, %v621, %v623
        %628 = vrot.lane.b32.xlu0 %v312, 9
        %v629 = vpop.permute.xlu0 %628
        %630 = vrot.lane.b32.xlu0 %v320, 9
        %v631 = vpop.permute.xlu0 %630
        %632 = vrot.lane.b32.xlu0 %v321, 9
        %v633 = vpop.permute.xlu0 %632
        %v634 = vsel %vm440, %v629, %v631
        %v635 = vsel %vm440, %v631, %v633
        %638 = vrot.lane.b32.xlu0 %v325, 10
        %v639 = vpop.permute.xlu0 %638
        %640 = vrot.lane.b32.xlu0 %v326, 10
        %v641 = vpop.permute.xlu0 %640
        %642 = vrot.lane.b32.xlu0 %v327, 10
        %v643 = vpop.permute.xlu0 %642
        %v644 = vsel %vm451, %v639, %v641
        %v645 = vsel %vm451, %v641, %v643
        %648 = vrot.lane.b32.xlu0 %v339, 11
        %v649 = vpop.permute.xlu0 %648
        %650 = vrot.lane.b32.xlu0 %v340, 11
        %v651 = vpop.permute.xlu0 %650
        %652 = vrot.lane.b32.xlu0 %v341, 11
        %v653 = vpop.permute.xlu0 %652
        %v654 = vsel %vm462, %v649, %v651
        %v655 = vsel %vm462, %v651, %v653
        %658 = vrot.lane.b32.xlu0 %v353, 12
        %v659 = vpop.permute.xlu0 %658
        %660 = vrot.lane.b32.xlu0 %v354, 12
        %v661 = vpop.permute.xlu0 %660
        %662 = vrot.lane.b32.xlu0 %v355, 12
        %v663 = vpop.permute.xlu0 %662
        %v664 = vsel %vm473, %v659, %v661
        %v665 = vsel %vm473, %v661, %v663
        %668 = vrot.lane.b32.xlu0 %v367, 13
        %v669 = vpop.permute.xlu0 %668
        %670 = vrot.lane.b32.xlu0 %v368, 13
        %v671 = vpop.permute.xlu0 %670
        %672 = vrot.lane.b32.xlu0 %v369, 13
        %v673 = vpop.permute.xlu0 %672
        %v674 = vsel %vm484, %v669, %v671
        %v675 = vsel %vm484, %v671, %v673
        %678 = vrot.lane.b32.xlu0 %v381, 14
        %v679 = vpop.permute.xlu0 %678
        %680 = vrot.lane.b32.xlu0 %v382, 14
        %v681 = vpop.permute.xlu0 %680
        %682 = vrot.lane.b32.xlu0 %v383, 14
        %v683 = vpop.permute.xlu0 %682
        %v684 = vsel %vm495, %v679, %v681
        %v685 = vsel %vm495, %v681, %v683
        %688 = vrot.lane.b32.xlu0 %v395, 15
        %v689 = vpop.permute.xlu0 %688
        %690 = vrot.lane.b32.xlu0 %v396, 15
        %v691 = vpop.permute.xlu0 %690
        %692 = vrot.lane.b32.xlu0 %v397, 15
        %v693 = vpop.permute.xlu0 %692
        %v694 = vsel %vm506, %v689, %v691
        %v695 = vsel %vm506, %v691, %v693
        %v698 = vsel %vm511, %v410, %v554
        %v699 = vsel %vm511, %v411, %v555
        %v700 = vsel %vm514, %v698, %v564
        %v701 = vsel %vm514, %v699, %v565
        %v702 = vsel %vm517, %v700, %v574
        %v703 = vsel %vm517, %v701, %v575
        %v704 = vsel %vm520, %v702, %v584
        %v705 = vsel %vm520, %v703, %v585
        %v706 = vsel %vm523, %v704, %v594
        %v707 = vsel %vm523, %v705, %v595
        %v708 = vsel %vm526, %v706, %v604
        %v709 = vsel %vm526, %v707, %v605
        %v710 = vsel %vm529, %v708, %v614
        %v711 = vsel %vm529, %v709, %v615
        %v712 = vsel %vm511, %v624, %v634
        %v713 = vsel %vm511, %v625, %v635
        %v714 = vsel %vm514, %v712, %v644
        %v715 = vsel %vm514, %v713, %v645
        %v716 = vsel %vm517, %v714, %v654
        %v717 = vsel %vm517, %v715, %v655
        %v718 = vsel %vm520, %v716, %v664
        %v719 = vsel %vm520, %v717, %v665
        %v720 = vsel %vm523, %v718, %v674
        %v721 = vsel %vm523, %v719, %v675
        %v722 = vsel %vm526, %v720, %v684
        %v723 = vsel %vm526, %v721, %v685
        %v724 = vsel %vm529, %v722, %v694
        %v725 = vsel %vm529, %v723, %v695
        %v726 = vld [vmem:[%s292] sm:$0xff]
        %s727 = scalar_lea.vmem %s292, 8
        %v728 = vld [vmem:[%s727] sm:$0xff]
        %vm729 = vcmask 130048
        %v731 = vsel %vm729, %v726, 0
        %733 = vmatprep.subr.mxu0 0.0
        %734 = vmatpush1.msra.mxu0 0.0
        %735 = vmatprep.subr.mxu0 0.0
        %736 = vmatpush1.msra.mxu0 0.0
        %737 = vmatprep.subr.mxu0 0.0
        %738 = vmatpush1.msra.mxu0 0.0
        %739 = vmatprep.subr.mxu0 0.0
        %740 = vmatpush1.msra.mxu0 0.0
        %741 = vmatprep.subr.mxu0 0.0
        %742 = vmatpush1.msra.mxu0 0.0
        %743 = vmatprep.subr.mxu0 0.0
        %744 = vmatpush1.msra.mxu0 0.0
        %745 = vmatprep.subr.mxu0 0.0
        %746 = vmatpush1.msra.mxu0 0.0
        %747 = vmatprep.subr.mxu0 0.0
        %748 = vmatpush1.msra.mxu0 0.0
        %749 = vmatprep.subr.mxu0 0.0
        %750 = vmatpush1.msra.mxu0 0.0
        %751 = vmatprep.subr.mxu0 0.0
        %752 = vmatpush1.msra.mxu0 0.0
        %753 = vmatprep.subr.mxu0 0.0
        %754 = vmatpush1.msra.mxu0 0.0
        %755 = vmatprep.subr.mxu0 0.0
        %756 = vmatpush1.msra.mxu0 0.0
        %757 = vmatprep.subr.mxu0 0.0
        %758 = vmatpush1.msra.mxu0 0.0
        %759 = vmatprep.subr.mxu0 0.0
        %760 = vmatpush1.msra.mxu0 0.0
        %v761 = vand.u32 %v545, 4294901760
        %762 = vmatprep.subr.mxu0 %v761
        %v763 = vand.u32 %v544, 4294901760
        %764 = vmatpush1.msra.mxu0 %v763
        %v765 = vand.u32 %v531, 4294901760
        %766 = vmatprep.subr.mxu0 %v765
        %v767 = vand.u32 %v530, 4294901760
        %768 = vmatpush1.msra.mxu0 %v767
        %769 = vmatprep.subr.mxu0 0.0
        %770 = vmatpush2.msra.mxu0 0.0
        %771 = vmatprep.subr.mxu0 0.0
        %772 = vmatpush2.msra.mxu0 0.0
        %773 = vmatprep.subr.mxu0 0.0
        %774 = vmatpush2.msra.mxu0 0.0
        %775 = vmatprep.subr.mxu0 0.0
        %776 = vmatpush2.msra.mxu0 0.0
        %777 = vmatprep.subr.mxu0 0.0
        %778 = vmatpush2.msra.mxu0 0.0
        %779 = vmatprep.subr.mxu0 0.0
        %780 = vmatpush2.msra.mxu0 0.0
        %781 = vmatprep.subr.mxu0 0.0
        %782 = vmatpush2.msra.mxu0 0.0
        %783 = vmatprep.subr.mxu0 0.0
        %784 = vmatpush2.msra.mxu0 0.0
        %785 = vmatprep.subr.mxu0 0.0
        %786 = vmatpush2.msra.mxu0 0.0
        %787 = vmatprep.subr.mxu0 0.0
        %788 = vmatpush2.msra.mxu0 0.0
        %789 = vmatprep.subr.mxu0 0.0
        %790 = vmatpush2.msra.mxu0 0.0
        %791 = vmatprep.subr.mxu0 0.0
        %792 = vmatpush2.msra.mxu0 0.0
        %793 = vmatprep.subr.mxu0 0.0
        %794 = vmatpush2.msra.mxu0 0.0
        %795 = vmatprep.subr.mxu0 0.0
        %796 = vmatpush2.msra.mxu0 0.0
        %797 = vmatprep.subr.mxu0 0.0
        %798 = vmatpush2.msra.mxu0 0.0
        %799 = vmatprep.subr.mxu0 0.0
        %800 = vmatpush2.msra.mxu0 0.0
        %801 = vmatprep.mubr.f32.mxu0 0.0
        %v802 = vand.u32 %v731, 4294901760
        %v803 = vsub.f32 %v731, %v802
        %v804 = vand.u32 %v803, 4294901760
        %v805 = vsub.f32 %v803, %v804
        %v806 = vand.u32 %v805, 4294901760
        %807 = vmatmul.mubr.f32.gmra.mxu0 %v806
        %v808 = vpop.f32.mrf.mxu0
        %v809 = vadd.f32 0.0, %v808
        %v810 = vpop.f32.mrf.mxu0
        %v811 = vadd.f32 0.0, %v810
        %812 = vdwg.mxu0
        %813 = vmatprep.subr.mxu0 0.0
        %814 = vmatpush1.msra.mxu0 0.0
        %815 = vmatprep.subr.mxu0 0.0
        %816 = vmatpush1.msra.mxu0 0.0
        %817 = vmatprep.subr.mxu0 0.0
        %818 = vmatpush1.msra.mxu0 0.0
        %819 = vmatprep.subr.mxu0 0.0
        %820 = vmatpush1.msra.mxu0 0.0
        %821 = vmatprep.subr.mxu0 0.0
        %822 = vmatpush1.msra.mxu0 0.0
        %823 = vmatprep.subr.mxu0 0.0
        %824 = vmatpush1.msra.mxu0 0.0
        %825 = vmatprep.subr.mxu0 0.0
        %826 = vmatpush1.msra.mxu0 0.0
        %827 = vmatprep.subr.mxu0 0.0
        %828 = vmatpush1.msra.mxu0 0.0
        %829 = vmatprep.subr.mxu0 0.0
        %830 = vmatpush1.msra.mxu0 0.0
        %831 = vmatprep.subr.mxu0 0.0
        %832 = vmatpush1.msra.mxu0 0.0
        %833 = vmatprep.subr.mxu0 0.0
        %834 = vmatpush1.msra.mxu0 0.0
        %835 = vmatprep.subr.mxu0 0.0
        %836 = vmatpush1.msra.mxu0 0.0
        %837 = vmatprep.subr.mxu0 0.0
        %838 = vmatpush1.msra.mxu0 0.0
        %839 = vmatprep.subr.mxu0 0.0
        %840 = vmatpush1.msra.mxu0 0.0
        %v841 = vand.u32 %v545, 4294901760
        %v842 = vsub.f32 %v545, %v841
        %v843 = vand.u32 %v842, 4294901760
        %v844 = vsub.f32 %v842, %v843
        %v845 = vand.u32 %v844, 4294901760
        %846 = vmatprep.subr.mxu0 %v845
        %v847 = vand.u32 %v544, 4294901760
        %v848 = vsub.f32 %v544, %v847
        %v849 = vand.u32 %v848, 4294901760
        %v850 = vsub.f32 %v848, %v849
        %v851 = vand.u32 %v850, 4294901760
        %852 = vmatpush1.msra.mxu0 %v851
        %v853 = vand.u32 %v531, 4294901760
        %v854 = vsub.f32 %v531, %v853
        %v855 = vand.u32 %v854, 4294901760
        %v856 = vsub.f32 %v854, %v855
        %v857 = vand.u32 %v856, 4294901760
        %858 = vmatprep.subr.mxu0 %v857
        %v859 = vand.u32 %v530, 4294901760
        %v860 = vsub.f32 %v530, %v859
        %v861 = vand.u32 %v860, 4294901760
        %v862 = vsub.f32 %v860, %v861
        %v863 = vand.u32 %v862, 4294901760
        %864 = vmatpush1.msra.mxu0 %v863
        %865 = vmatprep.subr.mxu0 0.0
        %866 = vmatpush2.msra.mxu0 0.0
        %867 = vmatprep.subr.mxu0 0.0
        %868 = vmatpush2.msra.mxu0 0.0
        %869 = vmatprep.subr.mxu0 0.0
        %870 = vmatpush2.msra.mxu0 0.0
        %871 = vmatprep.subr.mxu0 0.0
        %872 = vmatpush2.msra.mxu0 0.0
        %873 = vmatprep.subr.mxu0 0.0
        %874 = vmatpush2.msra.mxu0 0.0
        %875 = vmatprep.subr.mxu0 0.0
        %876 = vmatpush2.msra.mxu0 0.0
        %877 = vmatprep.subr.mxu0 0.0
        %878 = vmatpush2.msra.mxu0 0.0
        %879 = vmatprep.subr.mxu0 0.0
        %880 = vmatpush2.msra.mxu0 0.0
        %881 = vmatprep.subr.mxu0 0.0
        %882 = vmatpush2.msra.mxu0 0.0
        %883 = vmatprep.subr.mxu0 0.0
        %884 = vmatpush2.msra.mxu0 0.0
        %885 = vmatprep.subr.mxu0 0.0
        %886 = vmatpush2.msra.mxu0 0.0
        %887 = vmatprep.subr.mxu0 0.0
        %888 = vmatpush2.msra.mxu0 0.0
        %889 = vmatprep.subr.mxu0 0.0
        %890 = vmatpush2.msra.mxu0 0.0
        %891 = vmatprep.subr.mxu0 0.0
        %892 = vmatpush2.msra.mxu0 0.0
        %893 = vmatprep.subr.mxu0 0.0
        %894 = vmatpush2.msra.mxu0 0.0
        %895 = vmatprep.subr.mxu0 0.0
        %896 = vmatpush2.msra.mxu0 0.0
        %897 = vmatprep.mubr.f32.mxu0 0.0
        %v898 = vand.u32 %v731, 4294901760
        %899 = vmatmul.mubr.f32.gmra.mxu0 %v898
        %v900 = vpop.f32.mrf.mxu0
        %v901 = vadd.f32 %v809, %v900
        %v902 = vpop.f32.mrf.mxu0
        %v903 = vadd.f32 %v811, %v902
        %904 = vdwg.mxu0
        %905 = vmatprep.subr.mxu0 0.0
        %906 = vmatpush1.msra.mxu0 0.0
        %907 = vmatprep.subr.mxu0 0.0
        %908 = vmatpush1.msra.mxu0 0.0
        %909 = vmatprep.subr.mxu0 0.0
        %910 = vmatpush1.msra.mxu0 0.0
        %911 = vmatprep.subr.mxu0 0.0
        %912 = vmatpush1.msra.mxu0 0.0
        %913 = vmatprep.subr.mxu0 0.0
        %914 = vmatpush1.msra.mxu0 0.0
        %915 = vmatprep.subr.mxu0 0.0
        %916 = vmatpush1.msra.mxu0 0.0
        %917 = vmatprep.subr.mxu0 0.0
        %918 = vmatpush1.msra.mxu0 0.0
        %919 = vmatprep.subr.mxu0 0.0
        %920 = vmatpush1.msra.mxu0 0.0
        %921 = vmatprep.subr.mxu0 0.0
        %922 = vmatpush1.msra.mxu0 0.0
        %923 = vmatprep.subr.mxu0 0.0
        %924 = vmatpush1.msra.mxu0 0.0
        %925 = vmatprep.subr.mxu0 0.0
        %926 = vmatpush1.msra.mxu0 0.0
        %927 = vmatprep.subr.mxu0 0.0
        %928 = vmatpush1.msra.mxu0 0.0
        %929 = vmatprep.subr.mxu0 0.0
        %930 = vmatpush1.msra.mxu0 0.0
        %931 = vmatprep.subr.mxu0 0.0
        %932 = vmatpush1.msra.mxu0 0.0
        %v933 = vand.u32 %v545, 4294901760
        %v934 = vsub.f32 %v545, %v933
        %935 = vmatprep.subr.mxu0 %v934
        %v936 = vand.u32 %v544, 4294901760
        %v937 = vsub.f32 %v544, %v936
        %938 = vmatpush1.msra.mxu0 %v937
        %v939 = vand.u32 %v531, 4294901760
        %v940 = vsub.f32 %v531, %v939
        %941 = vmatprep.subr.mxu0 %v940
        %v942 = vand.u32 %v530, 4294901760
        %v943 = vsub.f32 %v530, %v942
        %944 = vmatpush1.msra.mxu0 %v943
        %945 = vmatprep.subr.mxu0 0.0
        %946 = vmatpush2.msra.mxu0 0.0
        %947 = vmatprep.subr.mxu0 0.0
        %948 = vmatpush2.msra.mxu0 0.0
        %949 = vmatprep.subr.mxu0 0.0
        %950 = vmatpush2.msra.mxu0 0.0
        %951 = vmatprep.subr.mxu0 0.0
        %952 = vmatpush2.msra.mxu0 0.0
        %953 = vmatprep.subr.mxu0 0.0
        %954 = vmatpush2.msra.mxu0 0.0
        %955 = vmatprep.subr.mxu0 0.0
        %956 = vmatpush2.msra.mxu0 0.0
        %957 = vmatprep.subr.mxu0 0.0
        %958 = vmatpush2.msra.mxu0 0.0
        %959 = vmatprep.subr.mxu0 0.0
        %960 = vmatpush2.msra.mxu0 0.0
        %961 = vmatprep.subr.mxu0 0.0
        %962 = vmatpush2.msra.mxu0 0.0
        %963 = vmatprep.subr.mxu0 0.0
        %964 = vmatpush2.msra.mxu0 0.0
        %965 = vmatprep.subr.mxu0 0.0
        %966 = vmatpush2.msra.mxu0 0.0
        %967 = vmatprep.subr.mxu0 0.0
        %968 = vmatpush2.msra.mxu0 0.0
        %969 = vmatprep.subr.mxu0 0.0
        %970 = vmatpush2.msra.mxu0 0.0
        %971 = vmatprep.subr.mxu0 0.0
        %972 = vmatpush2.msra.mxu0 0.0
        %973 = vmatprep.subr.mxu0 0.0
        %974 = vmatpush2.msra.mxu0 0.0
        %975 = vmatprep.subr.mxu0 0.0
        %976 = vmatpush2.msra.mxu0 0.0
        %977 = vmatprep.mubr.f32.mxu0 0.0
        %v978 = vand.u32 %v731, 4294901760
        %v979 = vsub.f32 %v731, %v978
        %980 = vmatmul.mubr.f32.gmra.mxu0 %v979
        %v981 = vpop.f32.mrf.mxu0
        %v982 = vadd.f32 %v901, %v981
        %v983 = vpop.f32.mrf.mxu0
        %v984 = vadd.f32 %v903, %v983
        %985 = vdwg.mxu0
        %986 = vmatprep.subr.mxu0 0.0
        %987 = vmatpush1.msra.mxu0 0.0
        %988 = vmatprep.subr.mxu0 0.0
        %989 = vmatpush1.msra.mxu0 0.0
        %990 = vmatprep.subr.mxu0 0.0
        %991 = vmatpush1.msra.mxu0 0.0
        %992 = vmatprep.subr.mxu0 0.0
        %993 = vmatpush1.msra.mxu0 0.0
        %994 = vmatprep.subr.mxu0 0.0
        %995 = vmatpush1.msra.mxu0 0.0
        %996 = vmatprep.subr.mxu0 0.0
        %997 = vmatpush1.msra.mxu0 0.0
        %998 = vmatprep.subr.mxu0 0.0
        %999 = vmatpush1.msra.mxu0 0.0
        %1000 = vmatprep.subr.mxu0 0.0
        %1001 = vmatpush1.msra.mxu0 0.0
        %1002 = vmatprep.subr.mxu0 0.0
        %1003 = vmatpush1.msra.mxu0 0.0
        %1004 = vmatprep.subr.mxu0 0.0
        %1005 = vmatpush1.msra.mxu0 0.0
        %1006 = vmatprep.subr.mxu0 0.0
        %1007 = vmatpush1.msra.mxu0 0.0
        %1008 = vmatprep.subr.mxu0 0.0
        %1009 = vmatpush1.msra.mxu0 0.0
        %1010 = vmatprep.subr.mxu0 0.0
        %1011 = vmatpush1.msra.mxu0 0.0
        %1012 = vmatprep.subr.mxu0 0.0
        %1013 = vmatpush1.msra.mxu0 0.0
        %v1014 = vand.u32 %v545, 4294901760
        %1015 = vmatprep.subr.mxu0 %v1014
        %v1016 = vand.u32 %v544, 4294901760
        %1017 = vmatpush1.msra.mxu0 %v1016
        %v1018 = vand.u32 %v531, 4294901760
        %1019 = vmatprep.subr.mxu0 %v1018
        %v1020 = vand.u32 %v530, 4294901760
        %1021 = vmatpush1.msra.mxu0 %v1020
        %1022 = vmatprep.subr.mxu0 0.0
        %1023 = vmatpush2.msra.mxu0 0.0
        %1024 = vmatprep.subr.mxu0 0.0
        %1025 = vmatpush2.msra.mxu0 0.0
        %1026 = vmatprep.subr.mxu0 0.0
        %1027 = vmatpush2.msra.mxu0 0.0
        %1028 = vmatprep.subr.mxu0 0.0
        %1029 = vmatpush2.msra.mxu0 0.0
        %1030 = vmatprep.subr.mxu0 0.0
        %1031 = vmatpush2.msra.mxu0 0.0
        %1032 = vmatprep.subr.mxu0 0.0
        %1033 = vmatpush2.msra.mxu0 0.0
        %1034 = vmatprep.subr.mxu0 0.0
        %1035 = vmatpush2.msra.mxu0 0.0
        %1036 = vmatprep.subr.mxu0 0.0
        %1037 = vmatpush2.msra.mxu0 0.0
        %1038 = vmatprep.subr.mxu0 0.0
        %1039 = vmatpush2.msra.mxu0 0.0
        %1040 = vmatprep.subr.mxu0 0.0
        %1041 = vmatpush2.msra.mxu0 0.0
        %1042 = vmatprep.subr.mxu0 0.0
        %1043 = vmatpush2.msra.mxu0 0.0
        %1044 = vmatprep.subr.mxu0 0.0
        %1045 = vmatpush2.msra.mxu0 0.0
        %1046 = vmatprep.subr.mxu0 0.0
        %1047 = vmatpush2.msra.mxu0 0.0
        %1048 = vmatprep.subr.mxu0 0.0
        %1049 = vmatpush2.msra.mxu0 0.0
        %1050 = vmatprep.subr.mxu0 0.0
        %1051 = vmatpush2.msra.mxu0 0.0
        %1052 = vmatprep.subr.mxu0 0.0
        %1053 = vmatpush2.msra.mxu0 0.0
        %1054 = vmatprep.mubr.f32.mxu0 0.0
        %v1055 = vand.u32 %v731, 4294901760
        %v1056 = vsub.f32 %v731, %v1055
        %v1057 = vand.u32 %v1056, 4294901760
        %1058 = vmatmul.mubr.f32.gmra.mxu0 %v1057
        %v1059 = vpop.f32.mrf.mxu0
        %v1060 = vadd.f32 %v982, %v1059
        %v1061 = vpop.f32.mrf.mxu0
        %v1062 = vadd.f32 %v984, %v1061
        %1063 = vdwg.mxu0
        %1064 = vmatprep.subr.mxu0 0.0
        %1065 = vmatpush1.msra.mxu0 0.0
        %1066 = vmatprep.subr.mxu0 0.0
        %1067 = vmatpush1.msra.mxu0 0.0
        %1068 = vmatprep.subr.mxu0 0.0
        %1069 = vmatpush1.msra.mxu0 0.0
        %1070 = vmatprep.subr.mxu0 0.0
        %1071 = vmatpush1.msra.mxu0 0.0
        %1072 = vmatprep.subr.mxu0 0.0
        %1073 = vmatpush1.msra.mxu0 0.0
        %1074 = vmatprep.subr.mxu0 0.0
        %1075 = vmatpush1.msra.mxu0 0.0
        %1076 = vmatprep.subr.mxu0 0.0
        %1077 = vmatpush1.msra.mxu0 0.0
        %1078 = vmatprep.subr.mxu0 0.0
        %1079 = vmatpush1.msra.mxu0 0.0
        %1080 = vmatprep.subr.mxu0 0.0
        %1081 = vmatpush1.msra.mxu0 0.0
        %1082 = vmatprep.subr.mxu0 0.0
        %1083 = vmatpush1.msra.mxu0 0.0
        %1084 = vmatprep.subr.mxu0 0.0
        %1085 = vmatpush1.msra.mxu0 0.0
        %1086 = vmatprep.subr.mxu0 0.0
        %1087 = vmatpush1.msra.mxu0 0.0
        %1088 = vmatprep.subr.mxu0 0.0
        %1089 = vmatpush1.msra.mxu0 0.0
        %1090 = vmatprep.subr.mxu0 0.0
        %1091 = vmatpush1.msra.mxu0 0.0
        %v1092 = vand.u32 %v545, 4294901760
        %v1093 = vsub.f32 %v545, %v1092
        %v1094 = vand.u32 %v1093, 4294901760
        %1095 = vmatprep.subr.mxu0 %v1094
        %v1096 = vand.u32 %v544, 4294901760
        %v1097 = vsub.f32 %v544, %v1096
        %v1098 = vand.u32 %v1097, 4294901760
        %1099 = vmatpush1.msra.mxu0 %v1098
        %v1100 = vand.u32 %v531, 4294901760
        %v1101 = vsub.f32 %v531, %v1100
        %v1102 = vand.u32 %v1101, 4294901760
        %1103 = vmatprep.subr.mxu0 %v1102
        %v1104 = vand.u32 %v530, 4294901760
        %v1105 = vsub.f32 %v530, %v1104
        %v1106 = vand.u32 %v1105, 4294901760
        %1107 = vmatpush1.msra.mxu0 %v1106
        %1108 = vmatprep.subr.mxu0 0.0
        %1109 = vmatpush2.msra.mxu0 0.0
        %1110 = vmatprep.subr.mxu0 0.0
        %1111 = vmatpush2.msra.mxu0 0.0
        %1112 = vmatprep.subr.mxu0 0.0
        %1113 = vmatpush2.msra.mxu0 0.0
        %1114 = vmatprep.subr.mxu0 0.0
        %1115 = vmatpush2.msra.mxu0 0.0
        %1116 = vmatprep.subr.mxu0 0.0
        %1117 = vmatpush2.msra.mxu0 0.0
        %1118 = vmatprep.subr.mxu0 0.0
        %1119 = vmatpush2.msra.mxu0 0.0
        %1120 = vmatprep.subr.mxu0 0.0
        %1121 = vmatpush2.msra.mxu0 0.0
        %1122 = vmatprep.subr.mxu0 0.0
        %1123 = vmatpush2.msra.mxu0 0.0
        %1124 = vmatprep.subr.mxu0 0.0
        %1125 = vmatpush2.msra.mxu0 0.0
        %1126 = vmatprep.subr.mxu0 0.0
        %1127 = vmatpush2.msra.mxu0 0.0
        %1128 = vmatprep.subr.mxu0 0.0
        %1129 = vmatpush2.msra.mxu0 0.0
        %1130 = vmatprep.subr.mxu0 0.0
        %1131 = vmatpush2.msra.mxu0 0.0
        %1132 = vmatprep.subr.mxu0 0.0
        %1133 = vmatpush2.msra.mxu0 0.0
        %1134 = vmatprep.subr.mxu0 0.0
        %1135 = vmatpush2.msra.mxu0 0.0
        %1136 = vmatprep.subr.mxu0 0.0
        %1137 = vmatpush2.msra.mxu0 0.0
        %1138 = vmatprep.subr.mxu0 0.0
        %1139 = vmatpush2.msra.mxu0 0.0
        %1140 = vmatprep.mubr.f32.mxu0 0.0
        %v1141 = vand.u32 %v731, 4294901760
        %1142 = vmatmul.mubr.f32.gmra.mxu0 %v1141
        %v1143 = vpop.f32.mrf.mxu0
        %v1144 = vadd.f32 %v1060, %v1143
        %v1145 = vpop.f32.mrf.mxu0
        %v1146 = vadd.f32 %v1062, %v1145
        %1147 = vdwg.mxu0
        %1148 = vmatprep.subr.mxu0 0.0
        %1149 = vmatpush1.msra.mxu0 0.0
        %1150 = vmatprep.subr.mxu0 0.0
        %1151 = vmatpush1.msra.mxu0 0.0
        %1152 = vmatprep.subr.mxu0 0.0
        %1153 = vmatpush1.msra.mxu0 0.0
        %1154 = vmatprep.subr.mxu0 0.0
        %1155 = vmatpush1.msra.mxu0 0.0
        %1156 = vmatprep.subr.mxu0 0.0
        %1157 = vmatpush1.msra.mxu0 0.0
        %1158 = vmatprep.subr.mxu0 0.0
        %1159 = vmatpush1.msra.mxu0 0.0
        %1160 = vmatprep.subr.mxu0 0.0
        %1161 = vmatpush1.msra.mxu0 0.0
        %1162 = vmatprep.subr.mxu0 0.0
        %1163 = vmatpush1.msra.mxu0 0.0
        %1164 = vmatprep.subr.mxu0 0.0
        %1165 = vmatpush1.msra.mxu0 0.0
        %1166 = vmatprep.subr.mxu0 0.0
        %1167 = vmatpush1.msra.mxu0 0.0
        %1168 = vmatprep.subr.mxu0 0.0
        %1169 = vmatpush1.msra.mxu0 0.0
        %1170 = vmatprep.subr.mxu0 0.0
        %1171 = vmatpush1.msra.mxu0 0.0
        %1172 = vmatprep.subr.mxu0 0.0
        %1173 = vmatpush1.msra.mxu0 0.0
        %1174 = vmatprep.subr.mxu0 0.0
        %1175 = vmatpush1.msra.mxu0 0.0
        %v1176 = vand.u32 %v545, 4294901760
        %1177 = vmatprep.subr.mxu0 %v1176
        %v1178 = vand.u32 %v544, 4294901760
        %1179 = vmatpush1.msra.mxu0 %v1178
        %v1180 = vand.u32 %v531, 4294901760
        %1181 = vmatprep.subr.mxu0 %v1180
        %v1182 = vand.u32 %v530, 4294901760
        %1183 = vmatpush1.msra.mxu0 %v1182
        %1184 = vmatprep.subr.mxu0 0.0
        %1185 = vmatpush2.msra.mxu0 0.0
        %1186 = vmatprep.subr.mxu0 0.0
        %1187 = vmatpush2.msra.mxu0 0.0
        %1188 = vmatprep.subr.mxu0 0.0
        %1189 = vmatpush2.msra.mxu0 0.0
        %1190 = vmatprep.subr.mxu0 0.0
        %1191 = vmatpush2.msra.mxu0 0.0
        %1192 = vmatprep.subr.mxu0 0.0
        %1193 = vmatpush2.msra.mxu0 0.0
        %1194 = vmatprep.subr.mxu0 0.0
        %1195 = vmatpush2.msra.mxu0 0.0
        %1196 = vmatprep.subr.mxu0 0.0
        %1197 = vmatpush2.msra.mxu0 0.0
        %1198 = vmatprep.subr.mxu0 0.0
        %1199 = vmatpush2.msra.mxu0 0.0
        %1200 = vmatprep.subr.mxu0 0.0
        %1201 = vmatpush2.msra.mxu0 0.0
        %1202 = vmatprep.subr.mxu0 0.0
        %1203 = vmatpush2.msra.mxu0 0.0
        %1204 = vmatprep.subr.mxu0 0.0
        %1205 = vmatpush2.msra.mxu0 0.0
        %1206 = vmatprep.subr.mxu0 0.0
        %1207 = vmatpush2.msra.mxu0 0.0
        %1208 = vmatprep.subr.mxu0 0.0
        %1209 = vmatpush2.msra.mxu0 0.0
        %1210 = vmatprep.subr.mxu0 0.0
        %1211 = vmatpush2.msra.mxu0 0.0
        %1212 = vmatprep.subr.mxu0 0.0
        %1213 = vmatpush2.msra.mxu0 0.0
        %1214 = vmatprep.subr.mxu0 0.0
        %1215 = vmatpush2.msra.mxu0 0.0
        %1216 = vmatprep.mubr.f32.mxu0 0.0
        %v1217 = vand.u32 %v731, 4294901760
        %1218 = vmatmul.mubr.f32.gmra.mxu0 %v1217
        %v1219 = vpop.f32.mrf.mxu0
        %v1220 = vadd.f32 %v1144, %v1219
        %v1221 = vpop.f32.mrf.mxu0
        %v1222 = vadd.f32 %v1146, %v1221
        %1223 = vdwg.mxu0
        %v1225 = vsel %vm729, %v728, 0
        %1227 = vmatprep.subr.mxu0 0.0
        %1228 = vmatpush1.msra.mxu0 0.0
        %1229 = vmatprep.subr.mxu0 0.0
        %1230 = vmatpush1.msra.mxu0 0.0
        %1231 = vmatprep.subr.mxu0 0.0
        %1232 = vmatpush1.msra.mxu0 0.0
        %1233 = vmatprep.subr.mxu0 0.0
        %1234 = vmatpush1.msra.mxu0 0.0
        %1235 = vmatprep.subr.mxu0 0.0
        %1236 = vmatpush1.msra.mxu0 0.0
        %1237 = vmatprep.subr.mxu0 0.0
        %1238 = vmatpush1.msra.mxu0 0.0
        %1239 = vmatprep.subr.mxu0 0.0
        %1240 = vmatpush1.msra.mxu0 0.0
        %1241 = vmatprep.subr.mxu0 0.0
        %1242 = vmatpush1.msra.mxu0 0.0
        %1243 = vmatprep.subr.mxu0 0.0
        %1244 = vmatpush1.msra.mxu0 0.0
        %1245 = vmatprep.subr.mxu0 0.0
        %1246 = vmatpush1.msra.mxu0 0.0
        %1247 = vmatprep.subr.mxu0 0.0
        %1248 = vmatpush1.msra.mxu0 0.0
        %1249 = vmatprep.subr.mxu0 0.0
        %1250 = vmatpush1.msra.mxu0 0.0
        %1251 = vmatprep.subr.mxu0 0.0
        %1252 = vmatpush1.msra.mxu0 0.0
        %1253 = vmatprep.subr.mxu0 0.0
        %1254 = vmatpush1.msra.mxu0 0.0
        %v1255 = vand.u32 %v725, 4294901760
        %1256 = vmatprep.subr.mxu0 %v1255
        %v1257 = vand.u32 %v724, 4294901760
        %1258 = vmatpush1.msra.mxu0 %v1257
        %v1259 = vand.u32 %v711, 4294901760
        %1260 = vmatprep.subr.mxu0 %v1259
        %v1261 = vand.u32 %v710, 4294901760
        %1262 = vmatpush1.msra.mxu0 %v1261
        %1263 = vmatprep.subr.mxu0 0.0
        %1264 = vmatpush2.msra.mxu0 0.0
        %1265 = vmatprep.subr.mxu0 0.0
        %1266 = vmatpush2.msra.mxu0 0.0
        %1267 = vmatprep.subr.mxu0 0.0
        %1268 = vmatpush2.msra.mxu0 0.0
        %1269 = vmatprep.subr.mxu0 0.0
        %1270 = vmatpush2.msra.mxu0 0.0
        %1271 = vmatprep.subr.mxu0 0.0
        %1272 = vmatpush2.msra.mxu0 0.0
        %1273 = vmatprep.subr.mxu0 0.0
        %1274 = vmatpush2.msra.mxu0 0.0
        %1275 = vmatprep.subr.mxu0 0.0
        %1276 = vmatpush2.msra.mxu0 0.0
        %1277 = vmatprep.subr.mxu0 0.0
        %1278 = vmatpush2.msra.mxu0 0.0
        %1279 = vmatprep.subr.mxu0 0.0
        %1280 = vmatpush2.msra.mxu0 0.0
        %1281 = vmatprep.subr.mxu0 0.0
        %1282 = vmatpush2.msra.mxu0 0.0
        %1283 = vmatprep.subr.mxu0 0.0
        %1284 = vmatpush2.msra.mxu0 0.0
        %1285 = vmatprep.subr.mxu0 0.0
        %1286 = vmatpush2.msra.mxu0 0.0
        %1287 = vmatprep.subr.mxu0 0.0
        %1288 = vmatpush2.msra.mxu0 0.0
        %1289 = vmatprep.subr.mxu0 0.0
        %1290 = vmatpush2.msra.mxu0 0.0
        %1291 = vmatprep.subr.mxu0 0.0
        %1292 = vmatpush2.msra.mxu0 0.0
        %1293 = vmatprep.subr.mxu0 0.0
        %1294 = vmatpush2.msra.mxu0 0.0
        %1295 = vmatprep.mubr.f32.mxu0 0.0
        %v1296 = vand.u32 %v1225, 4294901760
        %v1297 = vsub.f32 %v1225, %v1296
        %v1298 = vand.u32 %v1297, 4294901760
        %v1299 = vsub.f32 %v1297, %v1298
        %v1300 = vand.u32 %v1299, 4294901760
        %1301 = vmatmul.mubr.f32.gmra.mxu0 %v1300
        %v1302 = vpop.f32.mrf.mxu0
        %v1303 = vadd.f32 0.0, %v1302
        %v1304 = vpop.f32.mrf.mxu0
        %v1305 = vadd.f32 0.0, %v1304
        %1306 = vdwg.mxu0
        %1307 = vmatprep.subr.mxu0 0.0
        %1308 = vmatpush1.msra.mxu0 0.0
        %1309 = vmatprep.subr.mxu0 0.0
        %1310 = vmatpush1.msra.mxu0 0.0
        %1311 = vmatprep.subr.mxu0 0.0
        %1312 = vmatpush1.msra.mxu0 0.0
        %1313 = vmatprep.subr.mxu0 0.0
        %1314 = vmatpush1.msra.mxu0 0.0
        %1315 = vmatprep.subr.mxu0 0.0
        %1316 = vmatpush1.msra.mxu0 0.0
        %1317 = vmatprep.subr.mxu0 0.0
        %1318 = vmatpush1.msra.mxu0 0.0
        %1319 = vmatprep.subr.mxu0 0.0
        %1320 = vmatpush1.msra.mxu0 0.0
        %1321 = vmatprep.subr.mxu0 0.0
        %1322 = vmatpush1.msra.mxu0 0.0
        %1323 = vmatprep.subr.mxu0 0.0
        %1324 = vmatpush1.msra.mxu0 0.0
        %1325 = vmatprep.subr.mxu0 0.0
        %1326 = vmatpush1.msra.mxu0 0.0
        %1327 = vmatprep.subr.mxu0 0.0
        %1328 = vmatpush1.msra.mxu0 0.0
        %1329 = vmatprep.subr.mxu0 0.0
        %1330 = vmatpush1.msra.mxu0 0.0
        %1331 = vmatprep.subr.mxu0 0.0
        %1332 = vmatpush1.msra.mxu0 0.0
        %1333 = vmatprep.subr.mxu0 0.0
        %1334 = vmatpush1.msra.mxu0 0.0
        %v1335 = vand.u32 %v725, 4294901760
        %v1336 = vsub.f32 %v725, %v1335
        %v1337 = vand.u32 %v1336, 4294901760
        %v1338 = vsub.f32 %v1336, %v1337
        %v1339 = vand.u32 %v1338, 4294901760
        %1340 = vmatprep.subr.mxu0 %v1339
        %v1341 = vand.u32 %v724, 4294901760
        %v1342 = vsub.f32 %v724, %v1341
        %v1343 = vand.u32 %v1342, 4294901760
        %v1344 = vsub.f32 %v1342, %v1343
        %v1345 = vand.u32 %v1344, 4294901760
        %1346 = vmatpush1.msra.mxu0 %v1345
        %v1347 = vand.u32 %v711, 4294901760
        %v1348 = vsub.f32 %v711, %v1347
        %v1349 = vand.u32 %v1348, 4294901760
        %v1350 = vsub.f32 %v1348, %v1349
        %v1351 = vand.u32 %v1350, 4294901760
        %1352 = vmatprep.subr.mxu0 %v1351
        %v1353 = vand.u32 %v710, 4294901760
        %v1354 = vsub.f32 %v710, %v1353
        %v1355 = vand.u32 %v1354, 4294901760
        %v1356 = vsub.f32 %v1354, %v1355
        %v1357 = vand.u32 %v1356, 4294901760
        %1358 = vmatpush1.msra.mxu0 %v1357
        %1359 = vmatprep.subr.mxu0 0.0
        %1360 = vmatpush2.msra.mxu0 0.0
        %1361 = vmatprep.subr.mxu0 0.0
        %1362 = vmatpush2.msra.mxu0 0.0
        %1363 = vmatprep.subr.mxu0 0.0
        %1364 = vmatpush2.msra.mxu0 0.0
        %1365 = vmatprep.subr.mxu0 0.0
        %1366 = vmatpush2.msra.mxu0 0.0
        %1367 = vmatprep.subr.mxu0 0.0
        %1368 = vmatpush2.msra.mxu0 0.0
        %1369 = vmatprep.subr.mxu0 0.0
        %1370 = vmatpush2.msra.mxu0 0.0
        %1371 = vmatprep.subr.mxu0 0.0
        %1372 = vmatpush2.msra.mxu0 0.0
        %1373 = vmatprep.subr.mxu0 0.0
        %1374 = vmatpush2.msra.mxu0 0.0
        %1375 = vmatprep.subr.mxu0 0.0
        %1376 = vmatpush2.msra.mxu0 0.0
        %1377 = vmatprep.subr.mxu0 0.0
        %1378 = vmatpush2.msra.mxu0 0.0
        %1379 = vmatprep.subr.mxu0 0.0
        %1380 = vmatpush2.msra.mxu0 0.0
        %1381 = vmatprep.subr.mxu0 0.0
        %1382 = vmatpush2.msra.mxu0 0.0
        %1383 = vmatprep.subr.mxu0 0.0
        %1384 = vmatpush2.msra.mxu0 0.0
        %1385 = vmatprep.subr.mxu0 0.0
        %1386 = vmatpush2.msra.mxu0 0.0
        %1387 = vmatprep.subr.mxu0 0.0
        %1388 = vmatpush2.msra.mxu0 0.0
        %1389 = vmatprep.subr.mxu0 0.0
        %1390 = vmatpush2.msra.mxu0 0.0
        %1391 = vmatprep.mubr.f32.mxu0 0.0
        %v1392 = vand.u32 %v1225, 4294901760
        %1393 = vmatmul.mubr.f32.gmra.mxu0 %v1392
        %v1394 = vpop.f32.mrf.mxu0
        %v1395 = vadd.f32 %v1303, %v1394
        %v1396 = vpop.f32.mrf.mxu0
        %v1397 = vadd.f32 %v1305, %v1396
        %1398 = vdwg.mxu0
        %1399 = vmatprep.subr.mxu0 0.0
        %1400 = vmatpush1.msra.mxu0 0.0
        %1401 = vmatprep.subr.mxu0 0.0
        %1402 = vmatpush1.msra.mxu0 0.0
        %1403 = vmatprep.subr.mxu0 0.0
        %1404 = vmatpush1.msra.mxu0 0.0
        %1405 = vmatprep.subr.mxu0 0.0
        %1406 = vmatpush1.msra.mxu0 0.0
        %1407 = vmatprep.subr.mxu0 0.0
        %1408 = vmatpush1.msra.mxu0 0.0
        %1409 = vmatprep.subr.mxu0 0.0
        %1410 = vmatpush1.msra.mxu0 0.0
        %1411 = vmatprep.subr.mxu0 0.0
        %1412 = vmatpush1.msra.mxu0 0.0
        %1413 = vmatprep.subr.mxu0 0.0
        %1414 = vmatpush1.msra.mxu0 0.0
        %1415 = vmatprep.subr.mxu0 0.0
        %1416 = vmatpush1.msra.mxu0 0.0
        %1417 = vmatprep.subr.mxu0 0.0
        %1418 = vmatpush1.msra.mxu0 0.0
        %1419 = vmatprep.subr.mxu0 0.0
        %1420 = vmatpush1.msra.mxu0 0.0
        %1421 = vmatprep.subr.mxu0 0.0
        %1422 = vmatpush1.msra.mxu0 0.0
        %1423 = vmatprep.subr.mxu0 0.0
        %1424 = vmatpush1.msra.mxu0 0.0
        %1425 = vmatprep.subr.mxu0 0.0
        %1426 = vmatpush1.msra.mxu0 0.0
        %v1427 = vand.u32 %v725, 4294901760
        %v1428 = vsub.f32 %v725, %v1427
        %1429 = vmatprep.subr.mxu0 %v1428
        %v1430 = vand.u32 %v724, 4294901760
        %v1431 = vsub.f32 %v724, %v1430
        %1432 = vmatpush1.msra.mxu0 %v1431
        %v1433 = vand.u32 %v711, 4294901760
        %v1434 = vsub.f32 %v711, %v1433
        %1435 = vmatprep.subr.mxu0 %v1434
        %v1436 = vand.u32 %v710, 4294901760
        %v1437 = vsub.f32 %v710, %v1436
        %1438 = vmatpush1.msra.mxu0 %v1437
        %1439 = vmatprep.subr.mxu0 0.0
        %1440 = vmatpush2.msra.mxu0 0.0
        %1441 = vmatprep.subr.mxu0 0.0
        %1442 = vmatpush2.msra.mxu0 0.0
        %1443 = vmatprep.subr.mxu0 0.0
        %1444 = vmatpush2.msra.mxu0 0.0
        %1445 = vmatprep.subr.mxu0 0.0
        %1446 = vmatpush2.msra.mxu0 0.0
        %1447 = vmatprep.subr.mxu0 0.0
        %1448 = vmatpush2.msra.mxu0 0.0
        %1449 = vmatprep.subr.mxu0 0.0
        %1450 = vmatpush2.msra.mxu0 0.0
        %1451 = vmatprep.subr.mxu0 0.0
        %1452 = vmatpush2.msra.mxu0 0.0
        %1453 = vmatprep.subr.mxu0 0.0
        %1454 = vmatpush2.msra.mxu0 0.0
        %1455 = vmatprep.subr.mxu0 0.0
        %1456 = vmatpush2.msra.mxu0 0.0
        %1457 = vmatprep.subr.mxu0 0.0
        %1458 = vmatpush2.msra.mxu0 0.0
        %1459 = vmatprep.subr.mxu0 0.0
        %1460 = vmatpush2.msra.mxu0 0.0
        %1461 = vmatprep.subr.mxu0 0.0
        %1462 = vmatpush2.msra.mxu0 0.0
        %1463 = vmatprep.subr.mxu0 0.0
        %1464 = vmatpush2.msra.mxu0 0.0
        %1465 = vmatprep.subr.mxu0 0.0
        %1466 = vmatpush2.msra.mxu0 0.0
        %1467 = vmatprep.subr.mxu0 0.0
        %1468 = vmatpush2.msra.mxu0 0.0
        %1469 = vmatprep.subr.mxu0 0.0
        %1470 = vmatpush2.msra.mxu0 0.0
        %1471 = vmatprep.mubr.f32.mxu0 0.0
        %v1472 = vand.u32 %v1225, 4294901760
        %v1473 = vsub.f32 %v1225, %v1472
        %1474 = vmatmul.mubr.f32.gmra.mxu0 %v1473
        %v1475 = vpop.f32.mrf.mxu0
        %v1476 = vadd.f32 %v1395, %v1475
        %v1477 = vpop.f32.mrf.mxu0
        %v1478 = vadd.f32 %v1397, %v1477
        %1479 = vdwg.mxu0
        %1480 = vmatprep.subr.mxu0 0.0
        %1481 = vmatpush1.msra.mxu0 0.0
        %1482 = vmatprep.subr.mxu0 0.0
        %1483 = vmatpush1.msra.mxu0 0.0
        %1484 = vmatprep.subr.mxu0 0.0
        %1485 = vmatpush1.msra.mxu0 0.0
        %1486 = vmatprep.subr.mxu0 0.0
        %1487 = vmatpush1.msra.mxu0 0.0
        %1488 = vmatprep.subr.mxu0 0.0
        %1489 = vmatpush1.msra.mxu0 0.0
        %1490 = vmatprep.subr.mxu0 0.0
        %1491 = vmatpush1.msra.mxu0 0.0
        %1492 = vmatprep.subr.mxu0 0.0
        %1493 = vmatpush1.msra.mxu0 0.0
        %1494 = vmatprep.subr.mxu0 0.0
        %1495 = vmatpush1.msra.mxu0 0.0
        %1496 = vmatprep.subr.mxu0 0.0
        %1497 = vmatpush1.msra.mxu0 0.0
        %1498 = vmatprep.subr.mxu0 0.0
        %1499 = vmatpush1.msra.mxu0 0.0
        %1500 = vmatprep.subr.mxu0 0.0
        %1501 = vmatpush1.msra.mxu0 0.0
        %1502 = vmatprep.subr.mxu0 0.0
        %1503 = vmatpush1.msra.mxu0 0.0
        %1504 = vmatprep.subr.mxu0 0.0
        %1505 = vmatpush1.msra.mxu0 0.0
        %1506 = vmatprep.subr.mxu0 0.0
        %1507 = vmatpush1.msra.mxu0 0.0
        %v1508 = vand.u32 %v725, 4294901760
        %1509 = vmatprep.subr.mxu0 %v1508
        %v1510 = vand.u32 %v724, 4294901760
        %1511 = vmatpush1.msra.mxu0 %v1510
        %v1512 = vand.u32 %v711, 4294901760
        %1513 = vmatprep.subr.mxu0 %v1512
        %v1514 = vand.u32 %v710, 4294901760
        %1515 = vmatpush1.msra.mxu0 %v1514
        %1516 = vmatprep.subr.mxu0 0.0
        %1517 = vmatpush2.msra.mxu0 0.0
        %1518 = vmatprep.subr.mxu0 0.0
        %1519 = vmatpush2.msra.mxu0 0.0
        %1520 = vmatprep.subr.mxu0 0.0
        %1521 = vmatpush2.msra.mxu0 0.0
        %1522 = vmatprep.subr.mxu0 0.0
        %1523 = vmatpush2.msra.mxu0 0.0
        %1524 = vmatprep.subr.mxu0 0.0
        %1525 = vmatpush2.msra.mxu0 0.0
        %1526 = vmatprep.subr.mxu0 0.0
        %1527 = vmatpush2.msra.mxu0 0.0
        %1528 = vmatprep.subr.mxu0 0.0
        %1529 = vmatpush2.msra.mxu0 0.0
        %1530 = vmatprep.subr.mxu0 0.0
        %1531 = vmatpush2.msra.mxu0 0.0
        %1532 = vmatprep.subr.mxu0 0.0
        %1533 = vmatpush2.msra.mxu0 0.0
        %1534 = vmatprep.subr.mxu0 0.0
        %1535 = vmatpush2.msra.mxu0 0.0
        %1536 = vmatprep.subr.mxu0 0.0
        %1537 = vmatpush2.msra.mxu0 0.0
        %1538 = vmatprep.subr.mxu0 0.0
        %1539 = vmatpush2.msra.mxu0 0.0
        %1540 = vmatprep.subr.mxu0 0.0
        %1541 = vmatpush2.msra.mxu0 0.0
        %1542 = vmatprep.subr.mxu0 0.0
        %1543 = vmatpush2.msra.mxu0 0.0
        %1544 = vmatprep.subr.mxu0 0.0
        %1545 = vmatpush2.msra.mxu0 0.0
        %1546 = vmatprep.subr.mxu0 0.0
        %1547 = vmatpush2.msra.mxu0 0.0
        %1548 = vmatprep.mubr.f32.mxu0 0.0
        %v1549 = vand.u32 %v1225, 4294901760
        %v1550 = vsub.f32 %v1225, %v1549
        %v1551 = vand.u32 %v1550, 4294901760
        %1552 = vmatmul.mubr.f32.gmra.mxu0 %v1551
        %v1553 = vpop.f32.mrf.mxu0
        %v1554 = vadd.f32 %v1476, %v1553
        %v1555 = vpop.f32.mrf.mxu0
        %v1556 = vadd.f32 %v1478, %v1555
        %1557 = vdwg.mxu0
        %1558 = vmatprep.subr.mxu0 0.0
        %1559 = vmatpush1.msra.mxu0 0.0
        %1560 = vmatprep.subr.mxu0 0.0
        %1561 = vmatpush1.msra.mxu0 0.0
        %1562 = vmatprep.subr.mxu0 0.0
        %1563 = vmatpush1.msra.mxu0 0.0
        %1564 = vmatprep.subr.mxu0 0.0
        %1565 = vmatpush1.msra.mxu0 0.0
        %1566 = vmatprep.subr.mxu0 0.0
        %1567 = vmatpush1.msra.mxu0 0.0
        %1568 = vmatprep.subr.mxu0 0.0
        %1569 = vmatpush1.msra.mxu0 0.0
        %1570 = vmatprep.subr.mxu0 0.0
        %1571 = vmatpush1.msra.mxu0 0.0
        %1572 = vmatprep.subr.mxu0 0.0
        %1573 = vmatpush1.msra.mxu0 0.0
        %1574 = vmatprep.subr.mxu0 0.0
        %1575 = vmatpush1.msra.mxu0 0.0
        %1576 = vmatprep.subr.mxu0 0.0
        %1577 = vmatpush1.msra.mxu0 0.0
        %1578 = vmatprep.subr.mxu0 0.0
        %1579 = vmatpush1.msra.mxu0 0.0
        %1580 = vmatprep.subr.mxu0 0.0
        %1581 = vmatpush1.msra.mxu0 0.0
        %1582 = vmatprep.subr.mxu0 0.0
        %1583 = vmatpush1.msra.mxu0 0.0
        %1584 = vmatprep.subr.mxu0 0.0
        %1585 = vmatpush1.msra.mxu0 0.0
        %v1586 = vand.u32 %v725, 4294901760
        %v1587 = vsub.f32 %v725, %v1586
        %v1588 = vand.u32 %v1587, 4294901760
        %1589 = vmatprep.subr.mxu0 %v1588
        %v1590 = vand.u32 %v724, 4294901760
        %v1591 = vsub.f32 %v724, %v1590
        %v1592 = vand.u32 %v1591, 4294901760
        %1593 = vmatpush1.msra.mxu0 %v1592
        %v1594 = vand.u32 %v711, 4294901760
        %v1595 = vsub.f32 %v711, %v1594
        %v1596 = vand.u32 %v1595, 4294901760
        %1597 = vmatprep.subr.mxu0 %v1596
        %v1598 = vand.u32 %v710, 4294901760
        %v1599 = vsub.f32 %v710, %v1598
        %v1600 = vand.u32 %v1599, 4294901760
        %1601 = vmatpush1.msra.mxu0 %v1600
        %1602 = vmatprep.subr.mxu0 0.0
        %1603 = vmatpush2.msra.mxu0 0.0
        %1604 = vmatprep.subr.mxu0 0.0
        %1605 = vmatpush2.msra.mxu0 0.0
        %1606 = vmatprep.subr.mxu0 0.0
        %1607 = vmatpush2.msra.mxu0 0.0
        %1608 = vmatprep.subr.mxu0 0.0
        %1609 = vmatpush2.msra.mxu0 0.0
        %1610 = vmatprep.subr.mxu0 0.0
        %1611 = vmatpush2.msra.mxu0 0.0
        %1612 = vmatprep.subr.mxu0 0.0
        %1613 = vmatpush2.msra.mxu0 0.0
        %1614 = vmatprep.subr.mxu0 0.0
        %1615 = vmatpush2.msra.mxu0 0.0
        %1616 = vmatprep.subr.mxu0 0.0
        %1617 = vmatpush2.msra.mxu0 0.0
        %1618 = vmatprep.subr.mxu0 0.0
        %1619 = vmatpush2.msra.mxu0 0.0
        %1620 = vmatprep.subr.mxu0 0.0
        %1621 = vmatpush2.msra.mxu0 0.0
        %1622 = vmatprep.subr.mxu0 0.0
        %1623 = vmatpush2.msra.mxu0 0.0
        %1624 = vmatprep.subr.mxu0 0.0
        %1625 = vmatpush2.msra.mxu0 0.0
        %1626 = vmatprep.subr.mxu0 0.0
        %1627 = vmatpush2.msra.mxu0 0.0
        %1628 = vmatprep.subr.mxu0 0.0
        %1629 = vmatpush2.msra.mxu0 0.0
        %1630 = vmatprep.subr.mxu0 0.0
        %1631 = vmatpush2.msra.mxu0 0.0
        %1632 = vmatprep.subr.mxu0 0.0
        %1633 = vmatpush2.msra.mxu0 0.0
        %1634 = vmatprep.mubr.f32.mxu0 0.0
        %v1635 = vand.u32 %v1225, 4294901760
        %1636 = vmatmul.mubr.f32.gmra.mxu0 %v1635
        %v1637 = vpop.f32.mrf.mxu0
        %v1638 = vadd.f32 %v1554, %v1637
        %v1639 = vpop.f32.mrf.mxu0
        %v1640 = vadd.f32 %v1556, %v1639
        %1641 = vdwg.mxu0
        %1642 = vmatprep.subr.mxu0 0.0
        %1643 = vmatpush1.msra.mxu0 0.0
        %1644 = vmatprep.subr.mxu0 0.0
        %1645 = vmatpush1.msra.mxu0 0.0
        %1646 = vmatprep.subr.mxu0 0.0
        %1647 = vmatpush1.msra.mxu0 0.0
        %1648 = vmatprep.subr.mxu0 0.0
        %1649 = vmatpush1.msra.mxu0 0.0
        %1650 = vmatprep.subr.mxu0 0.0
        %1651 = vmatpush1.msra.mxu0 0.0
        %1652 = vmatprep.subr.mxu0 0.0
        %1653 = vmatpush1.msra.mxu0 0.0
        %1654 = vmatprep.subr.mxu0 0.0
        %1655 = vmatpush1.msra.mxu0 0.0
        %1656 = vmatprep.subr.mxu0 0.0
        %1657 = vmatpush1.msra.mxu0 0.0
        %1658 = vmatprep.subr.mxu0 0.0
        %1659 = vmatpush1.msra.mxu0 0.0
        %1660 = vmatprep.subr.mxu0 0.0
        %1661 = vmatpush1.msra.mxu0 0.0
        %1662 = vmatprep.subr.mxu0 0.0
        %1663 = vmatpush1.msra.mxu0 0.0
        %1664 = vmatprep.subr.mxu0 0.0
        %1665 = vmatpush1.msra.mxu0 0.0
        %1666 = vmatprep.subr.mxu0 0.0
        %1667 = vmatpush1.msra.mxu0 0.0
        %1668 = vmatprep.subr.mxu0 0.0
        %1669 = vmatpush1.msra.mxu0 0.0
        %v1670 = vand.u32 %v725, 4294901760
        %1671 = vmatprep.subr.mxu0 %v1670
        %v1672 = vand.u32 %v724, 4294901760
        %1673 = vmatpush1.msra.mxu0 %v1672
        %v1674 = vand.u32 %v711, 4294901760
        %1675 = vmatprep.subr.mxu0 %v1674
        %v1676 = vand.u32 %v710, 4294901760
        %1677 = vmatpush1.msra.mxu0 %v1676
        %1678 = vmatprep.subr.mxu0 0.0
        %1679 = vmatpush2.msra.mxu0 0.0
        %1680 = vmatprep.subr.mxu0 0.0
        %1681 = vmatpush2.msra.mxu0 0.0
        %1682 = vmatprep.subr.mxu0 0.0
        %1683 = vmatpush2.msra.mxu0 0.0
        %1684 = vmatprep.subr.mxu0 0.0
        %1685 = vmatpush2.msra.mxu0 0.0
        %1686 = vmatprep.subr.mxu0 0.0
        %1687 = vmatpush2.msra.mxu0 0.0
        %1688 = vmatprep.subr.mxu0 0.0
        %1689 = vmatpush2.msra.mxu0 0.0
        %1690 = vmatprep.subr.mxu0 0.0
        %1691 = vmatpush2.msra.mxu0 0.0
        %1692 = vmatprep.subr.mxu0 0.0
        %1693 = vmatpush2.msra.mxu0 0.0
        %1694 = vmatprep.subr.mxu0 0.0
        %1695 = vmatpush2.msra.mxu0 0.0
        %1696 = vmatprep.subr.mxu0 0.0
        %1697 = vmatpush2.msra.mxu0 0.0
        %1698 = vmatprep.subr.mxu0 0.0
        %1699 = vmatpush2.msra.mxu0 0.0
        %1700 = vmatprep.subr.mxu0 0.0
        %1701 = vmatpush2.msra.mxu0 0.0
        %1702 = vmatprep.subr.mxu0 0.0
        %1703 = vmatpush2.msra.mxu0 0.0
        %1704 = vmatprep.subr.mxu0 0.0
        %1705 = vmatpush2.msra.mxu0 0.0
        %1706 = vmatprep.subr.mxu0 0.0
        %1707 = vmatpush2.msra.mxu0 0.0
        %1708 = vmatprep.subr.mxu0 0.0
        %1709 = vmatpush2.msra.mxu0 0.0
        %1710 = vmatprep.mubr.f32.mxu0 0.0
        %v1711 = vand.u32 %v1225, 4294901760
        %1712 = vmatmul.mubr.f32.gmra.mxu0 %v1711
        %v1713 = vpop.f32.mrf.mxu0
        %v1714 = vadd.f32 %v1638, %v1713
        %v1715 = vpop.f32.mrf.mxu0
        %v1716 = vadd.f32 %v1640, %v1715
        %1717 = vdwg.mxu0
        %v1718 = vld [vmem:[#allocation3] sm:$0x1]
        %v1719 = vmul.f32 %v1220, %v1220
        %v1720 = vmul.f32 %v1222, %v1222
        %v1721 = vadd.f32 %v1719, %v1720
        %1722 = vadd.xlane.f32.xlu0 %v1721
        %v1723 = vpop.xlane.xlu0 %1722
        %v1724 = vrot.slane %v1723, 4
        %v1725 = vadd.f32 %v1723, %v1724
        %v1726 = vrot.slane %v1725, 2
        %v1727 = vadd.f32 %v1725, %v1726
        %v1728 = vrot.slane %v1727, 1
        %v1729 = vadd.f32 %v1727, %v1728
        %s1730 = vtos %v1729
        %v1731 = vstv %s1730
        %v1732 = vadd.f32 %v1718, %v1731
        %1733 = vst [vmem:[#allocation3] sm:$0x1] %v1732
        %v1734 = vld [vmem:[#allocation3 + $0x1] sm:$0x1]
        %v1735 = vmul.f32 %v1714, %v1714
        %v1736 = vmul.f32 %v1716, %v1716
        %v1737 = vadd.f32 %v1735, %v1736
        %1738 = vadd.xlane.f32.xlu0 %v1737
        %v1739 = vpop.xlane.xlu0 %1738
        %v1740 = vrot.slane %v1739, 4
        %v1741 = vadd.f32 %v1739, %v1740
        %v1742 = vrot.slane %v1741, 2
        %v1743 = vadd.f32 %v1741, %v1742
        %v1744 = vrot.slane %v1743, 1
        %v1745 = vadd.f32 %v1743, %v1744
        %s1746 = vtos %v1745
        %v1747 = vstv %s1746
        %v1748 = vadd.f32 %v1734, %v1747
        %1749 = vst [vmem:[#allocation3 + $0x1] sm:$0x1] %v1748
        %s1750 = smul.u32 %s29, 256
        %v1751 = vstv %s304
        %v1752 = vmul.f32 %v1751, %v1220
        %v1753 = vmul.f32 %v1751, %v1222
        %s1754 = sshra.s32 %s1750, 7
        %s1755 = sand.u32 %s1750, 127
        %s1756 = smul.addr %s1754, 8
        %s1757 = scalar_lea.vmem %s280, %s1756 [#allocation8]
        %1758 = vst [vmem:[%s1757] sm:$0xff] %v1752
        %1759 = vst [vmem:[%s1757 + $0x8] sm:$0xff] %v1753
        %s1760 = smul.addr %s1754, 8
        %s1761 = scalar_lea.vmem %s287, %s1760 [#allocation10]
        %1762 = vst [vmem:[%s1761] sm:$0xff] %v1714
        %1763 = vst [vmem:[%s1761 + $0x8] sm:$0xff] %v1716
        %1764 = vst [vmem:[#allocation2] sm:$0x3] %v321
        // Predicated region
        $region41: #{_augment_pallas.1} parent=31 // pred_check
          %p1765 = pneg %p305
        $region42: #{_augment_pallas.1} parent=31 // pred_check_branch
          %1767 = sbr.rel (%p1765) target = $region44
        $region43: #{_augment_pallas.1} parent=31 // pred_region
          %v1768 = vld [vmem:[#allocation3] sm:$0x3]
          %v1769 = vmul.f32 %v1768, 0.00048828125
          %v1770 = vstv %s303
          %v1771 = vmul.f32 %v1769, %v1770
          %v1772 = vadd.f32 %v1771, 1e-08
          %v1774 = vrot.slane %v1772, 1
          %v1776 = vrcp.pop %v1774
          %v1777 = vmul.f32 %v1769, %v1776
          %v1778 = vrsqrt.pop %v1777
          %v1779 = vmul.f32 %v1777, %v1778
          %vm1780 = vcmp.eq.f32.partialorder %v1777, inf
          %v1781 = vsel %vm1780, %v1777, %v1779
          %vm1782 = vcmp.eq.f32.partialorder %v1777, 0.0
          %v1783 = vand.u32 %v1777, 2147483648
          %v1784 = vsel %vm1782, %v1783, %v1781
          %v1785 = vmul.f32 %v1751, %v1784
          %v1786 = vld [vmem:[%s287] sm:$0xff]
          %v1787 = vld [vmem:[%s287 + $0x8] sm:$0xff]
          %s1789 = vtos %v1785
          %v1790 = vstv %s1789
          %v1792 = vmul.f32 %v1790, %v1786
          %v1793 = vmul.f32 %v1790, %v1787
          %v1794 = vld [vmem:[%s280] sm:$0xff]
          %v1795 = vld [vmem:[%s280 + $0x8] sm:$0xff]
          %v1796 = vadd.f32 %v1794, %v1792
          %v1797 = vadd.f32 %v1795, %v1793
          %1798 = vst [vmem:[%s273] sm:$0xff] %v1796
          %1799 = vst [vmem:[%s273 + $0x8] sm:$0xff] %v1797
          %1800 = vst [vmem:[%s287] sm:$0xff] %v1792
          %1801 = vst [vmem:[%s287 + $0x8] sm:$0xff] %v1793
        $region44: #{_augment_pallas.1} parent=31 // pred_fallthru
          _
        %s1802 = sand.u32 %s119, 1
        %s1803 = scalar_lea.sflag [#allocation5], %s1802
        %s1804 = sand.u32 %s119, 1
        %s1805 = smul.addr %s1804, 16
        %s1806 = scalar_lea.vmem [#allocation7], %s1805
        %s1807 = sand.u32 %s24, 1
        %s1808 = scalar_lea.sflag [#allocation9], %s1807
        %s1809 = sand.u32 %s145, 1
        %s1810 = smul.addr %s1809, 16
        %s1811 = scalar_lea.vmem [#allocation8], %s1810
        %s1812 = sand.u32 %s24, 1
        %s1813 = scalar_lea.sflag [#allocation9], %s1812
        %s1814 = sand.u32 %s171, 1
        %s1815 = smul.addr %s1814, 16
        %s1816 = scalar_lea.vmem [#allocation10], %s1815
        // Predicated region
        $region45: #{_augment_pallas.1} parent=31 // pred_check
          %p1817 = pneg %p129
        $region46: #{_augment_pallas.1} parent=31 // pred_check_branch
          %1819 = sbr.rel (%p1817) target = $region48
        $region47: #{_augment_pallas.1} parent=31 // pred_region
          %s1821 = ssub.s32 256, 256
          %1822 = vsyncadd %s1803, %s1821
          %s1823 = smul.addr %s28, 2
          %s1824 = smul.addr %s1823, 128
          %s1825 = scalar_lea.hbm %s3, %s1824
          %s1827 = sshll.u32 %s1806, 4
          %s1828 = int_to_ptr.vmem [resolvable:$true] %s1827
          %1830 = dma.vmem_to_hbm [thread:$0]  %s1828, 256, %s1825, %s1803
        $region48: #{_augment_pallas.1} parent=31 // pred_fallthru
          _
        // Predicated region
        $region49: #{_augment_pallas.1} parent=31 // pred_check
          %p1831 = pneg %p155
        $region50: #{_augment_pallas.1} parent=31 // pred_check_branch
          %1833 = sbr.rel (%p1831) target = $region52
        $region51: #{_augment_pallas.1} parent=31 // pred_region
          %s1835 = ssub.s32 256, 256
          %1836 = vsyncadd %s1808, %s1835
          %s1837 = smul.addr %s28, 2
          %s1838 = smul.addr %s1837, 128
          %s1839 = scalar_lea.hbm %s4, %s1838
          %s1841 = sshll.u32 %s1811, 4
          %s1842 = int_to_ptr.vmem [resolvable:$true] %s1841
          %1844 = dma.vmem_to_hbm [thread:$0]  %s1842, 256, %s1839, %s1808
        $region52: #{_augment_pallas.1} parent=31 // pred_fallthru
          _
        // Predicated region
        $region53: #{_augment_pallas.1} parent=31 // pred_check
          %p1845 = pneg %p181
        $region54: #{_augment_pallas.1} parent=31 // pred_check_branch
          %1847 = sbr.rel (%p1845) target = $region56
        $region55: #{_augment_pallas.1} parent=31 // pred_region
          %s1849 = ssub.s32 256, 256
          %1850 = vsyncadd %s1813, %s1849
          %s1851 = smul.addr %s28, 2
          %s1852 = smul.addr %s1851, 128
          %s1853 = scalar_lea.hbm %s5, %s1852
          %s1855 = sshll.u32 %s1816, 4
          %s1856 = int_to_ptr.vmem [resolvable:$true] %s1855
          %1858 = dma.vmem_to_hbm [thread:$0]  %s1856, 256, %s1853, %s1813
        $region56: #{_augment_pallas.1} parent=31 // pred_fallthru
          _
      $region32: #{_augment_pallas.1} parent=5 // pred_fallthru
        _
      %p1859 = scmp.le.s32.totalorder 2, %s19
      // Predicated region
      $region57: #{_augment_pallas.1} parent=5 // pred_check
        %p1860 = pneg %p1859
      $region58: #{_augment_pallas.1} parent=5 // pred_check_branch
        %1862 = sbr.rel (%p1860) target = $region60
      $region59: #{_augment_pallas.1} parent=5 // pred_region
        %s1863 = ssub.s32 %s19, 2
        // Predicated region
        $region61: #{_augment_pallas.1} parent=59 // pred_check
          %p1864 = pneg %p135
        $region62: #{_augment_pallas.1} parent=59 // pred_check_branch
          %1866 = sbr.rel (%p1864) target = $region64
        $region63: #{_augment_pallas.1} parent=59 // pred_region
          %s1867 = sand.u32 %s120, 1
          %s1868 = scalar_lea.sflag [#allocation5], %s1867
          %s1869 = sand.u32 %s120, 1
          %s1870 = smul.addr %s1869, 16
          %s1871 = scalar_lea.vmem [#allocation7], %s1870
          %1872 = dma.done %s1868, 256
        $region64: #{_augment_pallas.1} parent=59 // pred_fallthru
          _
        // Predicated region
        $region65: #{_augment_pallas.1} parent=59 // pred_check
          %p1873 = pneg %p161
        $region66: #{_augment_pallas.1} parent=59 // pred_check_branch
          %1875 = sbr.rel (%p1873) target = $region68
        $region67: #{_augment_pallas.1} parent=59 // pred_region
          %s1876 = sand.u32 %s25, 1
          %s1877 = scalar_lea.sflag [#allocation9], %s1876
          %s1878 = sand.u32 %s146, 1
          %s1879 = smul.addr %s1878, 16
          %s1880 = scalar_lea.vmem [#allocation8], %s1879
          %1881 = dma.done %s1877, 256
        $region68: #{_augment_pallas.1} parent=59 // pred_fallthru
          _
        // Predicated region
        $region69: #{_augment_pallas.1} parent=59 // pred_check
          %p1882 = pneg %p187
        $region70: #{_augment_pallas.1} parent=59 // pred_check_branch
          %1884 = sbr.rel (%p1882) target = $region72
        $region71: #{_augment_pallas.1} parent=59 // pred_region
          %s1885 = sand.u32 %s25, 1
          %s1886 = scalar_lea.sflag [#allocation9], %s1885
          %s1887 = sand.u32 %s172, 1
          %s1888 = smul.addr %s1887, 16
          %s1889 = scalar_lea.vmem [#allocation10], %s1888
          %1890 = dma.done %s1886, 256
        $region72: #{_augment_pallas.1} parent=59 // pred_fallthru
          _
      $region60: #{_augment_pallas.1} parent=5 // pred_fallthru
        _
    $region6: #{_augment_pallas.1} parent=1 // loop_footer
      %s23 = sadd.s32 1, %s19
    $region7: #{_augment_pallas.1} parent=1 // loop_footer_branch
      %18 = sbr.rel target = $region3
    $region8: #{_augment_pallas.1} parent=1 // loop_exit
      _
    %1891 = vsyncpa [#allocation5], 1
    %s1892 = scalar_lea.sflag [#allocation5], 1
    %1893 = vsyncpa %s1892, 1
    %1894 = vsyncpa [#allocation9], 1
    %s1895 = scalar_lea.sflag [#allocation9], 1
    %1896 = vsyncpa %s1895, 1
    %1897 = vsyncpa [#allocation6], 1
    %s1898 = scalar_lea.sflag [#allocation6], 1
    %1899 = vsyncpa %s1898, 1

</llo_original>
